<compile_context>
chip_gen: v7x
topology: tpu7x:2x2x1
jax: 0.10.0
libtpu: 0.0.40
codegen_flags: <defaults>
</compile_context>

<pallas_src>
import jax
import jax.numpy as jnp
import numpy as np
from jax import lax
from jax.experimental import pallas as pl
from jax.experimental.pallas import tpu as pltpu

# ---- model hyper-parameters (num_layers=1 implied by .squeeze-like indexing) ----
INPUT_SIZE = 8
STATE_DIM = 2                      # matches the fixed 2x2 matrix A in the reference
HIDDEN = 32                        # hidden_size = z_size - state_dim
Z_SIZE = HIDDEN + STATE_DIM        # z_size (carried row width: [x | h])
MHU = 1.5
A_NP = np.array([[MHU, -MHU], [1.0 / MHU, 0.0]], dtype=np.float32)

GN = 4 * HIDDEN                    # gate columns [i|f|o|g]  == 128 exactly
XCOLS = STATE_DIM + 1 + INPUT_SIZE  # feature columns [tau, tau, 1, input(8)] = 11
AX_PAD = 128                       # fused (alpha_gate | W__h_to_x), one MXU tile


def _make_kernel(Bp, Tc, T_last, nc):
    """Builds the chunked recurrence kernel for static (Bp, Tc, T_last, nc)."""
    S, H = STATE_DIM, HIDDEN
    TCB = Tc * Bp

    def kernel(x2d_ref, z0_ref, c0_ref, win_ref, wrec_ref, wax_ref, bax_ref,
               out_ref, zf_ref, cf_ref, gin_sc):
        # chunk 0: seed the resident final-state outputs with the initial state.
        @pl.when(pl.program_id(0) == 0)
        def _seed():
            zf_ref[...] = z0_ref[...]
            cf_ref[...] = c0_ref[...]

        # Hoisted input projection for the whole chunk (bias folded in via the
        # constant-1 feature column).  Tiled by rows to bound register pressure.
        win = win_ref[...]
        for r0 in range(0, TCB, 256):
            rt = min(256, TCB - r0)
            gin_sc[r0:r0 + rt, :] = jnp.dot(
                x2d_ref[r0:r0 + rt, :], win, preferred_element_type=jnp.float32)

        wrec = wrec_ref[...]          # (Z_SIZE, 128): rows [x | h]
        wax = wax_ref[...]            # (H, 128): cols [alpha_pre | x_hat | 0...]
        bax = bax_ref[...]            # (1, 128)

        def step(t, carry):
            z_prev, c_prev = carry                      # (Bp, Z_SIZE)=[x|h], (Bp, H)
            row = pl.multiple_of(t * Bp, 8)
            xrow = x2d_ref[pl.ds(row, Bp), :]           # (Bp, XCOLS)
            # single (Bp,Z_SIZE)@(Z_SIZE,128) MXU matmul -> gates [i|f|o|g]
            g = (gin_sc[pl.ds(row, Bp), :]
                 + jnp.dot(z_prev, wrec, preferred_element_type=jnp.float32))
            sg = jax.nn.sigmoid(g[:, 0:3 * H])          # i|f|o in one contiguous pass
            i_g = sg[:, 0:H]
            f_g = sg[:, H:2 * H]
            o_g = sg[:, 2 * H:3 * H]
            g_g = jnp.tanh(g[:, 3 * H:4 * H])
            c_new = f_g * c_prev + i_g * g_g
            h_new = o_g * jnp.tanh(c_new)

            # --- continuous-state path (off the serial h-chain; overlaps MXU) ---
            x_prev = z_prev[:, 0:S]                     # free prefix slice
            tau2 = xrow[:, 0:S]                         # tau duplicated on 2 lanes
            x0 = x_prev[:, 0:1]
            x1 = x_prev[:, 1:2]
            a_x = jnp.concatenate(
                [MHU * (x0 - x1), (1.0 / MHU) * x0], axis=1)   # A @ x (VPU, 2x2 const)
            x_mid = x_prev + tau2 * a_x                 # forward-Euler discretisation
            # fused alpha_gate | W__h_to_x: one (Bp,H)@(H,128) MXU pass,
            # only 4 columns meaningful; sigmoid over 2 lanes only.
            ax = jnp.dot(h_new, wax, preferred_element_type=jnp.float32) + bax
            alpha = jax.nn.sigmoid(ax[:, 0:S])
            x_hat = ax[:, S:2 * S]
            x_next = x_mid + alpha * (x_hat - x_mid)    # (1-a)*x_mid + a*x_hat

            z_new = jnp.concatenate([x_next, h_new], axis=1)   # (Bp, Z_SIZE) [x|h]
            out_ref[t] = z_new
            return z_new, c_new

        def run_chunk(nsteps):
            z_fin, c_fin = lax.fori_loop(
                0, nsteps, step, (zf_ref[...], cf_ref[...]),
                unroll=True if nsteps <= 64 else 16)
            # carry state to the next chunk / expose final state.
            zf_ref[...] = z_fin
            cf_ref[...] = c_fin

        if T_last == Tc:                    # uniform chunks (static decision)
            run_chunk(Tc)
        else:                               # last chunk is shorter: static trip count
            @pl.when(pl.program_id(0) != nc - 1)
            def _full():
                run_chunk(Tc)

            @pl.when(pl.program_id(0) == nc - 1)
            def _tail():
                run_chunk(T_last)

    return kernel


def lstm_forward(rnn_input, tau, z0, cz0, packed_params, *, max_chunk=256):
    """rnn_input: (B, T, I), tau: (B, T, 1), z0/cz0: (B, Z_SIZE) in [x|h] order."""
    B, T, I = rnn_input.shape
    S, H = STATE_DIM, HIDDEN
    Win, Wrec, Wax, bax = packed_params

    Bp = max(8, ((B + 7) // 8) * 8)          # pad batch to the f32 sublane tile
    Tc = min(T, max_chunk)                    # fixed time chunk
    NC = -(-T // Tc)                          # cdiv; pad T up, no divisor search
    T_pad = NC * Tc
    T_last = T - (NC - 1) * Tc                # static length of the last chunk
    # VMEM per chunk (x2d + out blocks double-buffered + gin scratch) stays
    # ~5-6 MiB at Tc=256 -> fine on v5e/v6e (128 MiB) and v7x (64 MiB).

    # time-major features: columns [tau, tau, 1, input(8)]; batch/time padded.
    x_tm = jnp.transpose(rnn_input, (1, 0, 2)).astype(jnp.float32)     # (T, B, I)
    tau_tm = jnp.transpose(tau, (1, 0, 2)).astype(jnp.float32)         # (T, B, 1)
    feats = jnp.concatenate(
        [jnp.broadcast_to(tau_tm, (T, B, S)),
         jnp.ones((T, B, 1), jnp.float32),
         x_tm], axis=-1)                                               # (T, B, XCOLS)
    feats = jnp.pad(feats, ((0, T_pad - T), (0, Bp - B), (0, 0)))
    x2d = feats.reshape(T_pad * Bp, XCOLS)

    z0_p = jnp.zeros((Bp, Z_SIZE), jnp.float32).at[:B, :].set(z0.astype(jnp.float32))
    c0_p = jnp.zeros((Bp, H), jnp.float32).at[:B, :].set(cz0[:, S:].astype(jnp.float32))

    kernel = _make_kernel(Bp, Tc, T_last, NC)

    grid_spec = pltpu.PrefetchScalarGridSpec(
        num_scalar_prefetch=0,
        grid=(NC,),
        in_specs=[
            pl.BlockSpec((Tc * Bp, XCOLS), lambda c: (c, 0)),
            pl.BlockSpec((Bp, Z_SIZE), lambda c: (0, 0)),
            pl.BlockSpec((Bp, H), lambda c: (0, 0)),
            pl.BlockSpec(Win.shape, lambda c: (0, 0)),
            pl.BlockSpec(Wrec.shape, lambda c: (0, 0)),
            pl.BlockSpec(Wax.shape, lambda c: (0, 0)),
            pl.BlockSpec(bax.shape, lambda c: (0, 0)),
        ],
        out_specs=[
            pl.BlockSpec((Tc, Bp, Z_SIZE), lambda c: (c, 0, 0)),
            pl.BlockSpec((Bp, Z_SIZE), lambda c: (0, 0)),   # resident state carry
            pl.BlockSpec((Bp, H), lambda c: (0, 0)),        # resident state carry
        ],
        scratch_shapes=[pltpu.VMEM((Tc * Bp, GN), jnp.float32)],
    )
    out_tm, zf, cf = pl.pallas_call(
        kernel,
        out_shape=(
            jax.ShapeDtypeStruct((T_pad, Bp, Z_SIZE), jnp.float32),
            jax.ShapeDtypeStruct((Bp, Z_SIZE), jnp.float32),
            jax.ShapeDtypeStruct((Bp, H), jnp.float32),
        ),
        grid_spec=grid_spec,
        # NOTE: must stay "arbitrary" -- zf/cf carry state across grid steps.
        compiler_params=pltpu.CompilerParams(
            dimension_semantics=("arbitrary",),
            vmem_limit_bytes=32 * 1024 * 1024),
    )(x2d, z0_p, c0_p, Win, Wrec, Wax, bax)

    outputs = jnp.transpose(out_tm[:T, :B, :], (1, 0, 2))      # (B, T, Z) [x|h]
    z_f = zf[:B, :][None]                                      # (1, B, Z)
    cz_f = jnp.concatenate([cz0[:, :S], cf[:B]], axis=1)[None]  # (1, B, Z)
    return outputs, (z_f, cz_f)


# --------------------------- parameters & reference ---------------------------

def init_params(key):
    """Canonical (PyTorch-like) parameters: W/b in [i|f|g|o] gate order."""
    k1, k2, k3, k4, k5, k6 = jax.random.split(key, 6)
    d_in = STATE_DIM + INPUT_SIZE + HIDDEN
    s = 1.0 / np.sqrt(d_in)
    W = jax.random.uniform(k1, (d_in, 4 * HIDDEN), jnp.float32, -s, s)
    b = jax.random.uniform(k2, (1, 4 * HIDDEN), jnp.float32, -s, s)
    sh = 1.0 / np.sqrt(HIDDEN)
    Wa = jax.random.uniform(k3, (HIDDEN, STATE_DIM), jnp.float32, -sh, sh)
    ba = jax.random.uniform(k4, (1, STATE_DIM), jnp.float32, -sh, sh)
    Wxh = jax.random.uniform(k5, (HIDDEN, STATE_DIM), jnp.float32, -sh, sh)
    bxh = jax.random.uniform(k6, (1, STATE_DIM), jnp.float32, -sh, sh)
    return W, b, Wa, ba, Wxh, bxh


def pack_params(params):
    """Repack canonical params into the kernel's fused, lane-friendly layout."""
    W, b, Wa, ba, Wxh, bxh = params
    S, H, I = STATE_DIM, HIDDEN, INPUT_SIZE
    # gate-column reorder [i|f|g|o] -> [i|f|o|g] (contiguous sigmoid lanes)
    perm = lambda M: jnp.concatenate(
        [M[:, 0:H], M[:, H:2 * H], M[:, 3 * H:4 * H], M[:, 2 * H:3 * H]], axis=1)
    Wp, bp = perm(W), perm(b)
    # recurrent weight over the carried row [x | h]  -> exactly (Z_SIZE, 128)
    Wrec = jnp.zeros((Z_SIZE, GN), jnp.float32)
    Wrec = Wrec.at[0:S, :].set(Wp[0:S])                       # x rows
    Wrec = Wrec.at[S:S + H, :].set(Wp[S + I:S + I + H])       # h rows
    # input projection over feature columns [tau, tau, 1, input]; bias folded in.
    Win = jnp.zeros((XCOLS, GN), jnp.float32)
    Win = Win.at[S, :].set(bp[0])                             # constant-1 column
    Win = Win.at[S + 1:S + 1 + I, :].set(Wp[S:S + I])         # input rows
    # fused alpha_gate | W__h_to_x (only 4 meaningful columns; lane-padded tile)
    Wax = jnp.zeros((HIDDEN, AX_PAD), jnp.float32).at[:, :S].set(Wa).at[:, S:2 * S].set(Wxh)
    bax = jnp.zeros((1, AX_PAD), jnp.float32).at[:, :S].set(ba).at[:, S:2 * S].set(bxh)
    return Win, Wrec, Wax, bax


def lstm_reference(rnn_input, tau, z0, cz0, params):
    """Pure-JAX reference mirroring the PyTorch forward (for verification)."""
    W, b, Wa, ba, Wxh, bxh = params
    B, T, _ = rnn_input.shape
    S, H = STATE_DIM, HIDDEN
    A = jnp.asarray(A_NP)
    x, h, c, c_x = z0[:, :S], z0[:, S:], cz0[:, S:], cz0[:, :S]
    outs = []
    for t in range(T):
        cat = jnp.concatenate([x, rnn_input[:, t, :], h], axis=1)
        gates = cat @ W + b
        i_g = jax.nn.sigmoid(gates[:, :H])
        f_g = jax.nn.sigmoid(gates[:, H:2 * H])
        g_g = jnp.tanh(gates[:, 2 * H:3 * H])
        o_g = jax.nn.sigmoid(gates[:, 3 * H:])
        c = f_g * c + i_g * g_g
        h = o_g * jnp.tanh(c)
        x_mid = x + tau[:, t, :] * (x @ A.T)
        alpha = jax.nn.sigmoid(h @ Wa + ba)
        x_hat = h @ Wxh + bxh
        x = (1.0 - alpha) * x_mid + alpha * x_hat
        outs.append(jnp.concatenate([x, h], axis=1))
    outputs = jnp.stack(outs, axis=1)
    z_f = jnp.concatenate([x, h], axis=1)[None]
    cz_f = jnp.concatenate([c_x, c], axis=1)[None]
    return outputs, (z_f, cz_f)


if __name__ == "__main__":
    B, T = 4, 8
    key = jax.random.PRNGKey(0)
    kx, kt, kz, kc, kp = jax.random.split(key, 5)

    rnn_input = jax.random.normal(kx, (B, T, INPUT_SIZE), jnp.float32)
    tau = jax.random.uniform(kt, (B, T, 1), jnp.float32, 0.01, 0.1)
    z0 = jax.random.normal(kz, (B, Z_SIZE), jnp.float32) * 0.1
    cz0 = jax.random.normal(kc, (B, Z_SIZE), jnp.float32) * 0.1
    lengths = jnp.full((B,), T, jnp.int32)   # PackedSequence emulation (full length)

    canonical = init_params(kp)
    packed = pack_params(canonical)

    fwd = jax.jit(lstm_forward, static_argnames=("max_chunk",))

    # single-chunk path (Tc = T)
    outputs, (z_f, cz_f) = jax.block_until_ready(fwd(rnn_input, tau, z0, cz0, packed))

    ref_out, (ref_z, ref_cz) = lstm_reference(rnn_input, tau, z0, cz0, canonical)
    assert outputs.shape == (B, T, Z_SIZE)
    assert z_f.shape == (1, B, Z_SIZE) and cz_f.shape == (1, B, Z_SIZE)
    np.testing.assert_allclose(np.asarray(outputs), np.asarray(ref_out), rtol=1e-4, atol=2e-5)
    np.testing.assert_allclose(np.asarray(z_f), np.asarray(ref_z), rtol=1e-4, atol=2e-5)
    np.testing.assert_allclose(np.asarray(cz_f), np.asarray(ref_cz), rtol=1e-4, atol=2e-5)

    # multi-chunk path with a partial last chunk (Tc=3 -> chunks of 3, 3, 2)
    out2, (z2, cz2) = jax.block_until_ready(
        fwd(rnn_input, tau, z0, cz0, packed, max_chunk=3))
    np.testing.assert_allclose(np.asarray(out2), np.asarray(ref_out), rtol=1e-4, atol=2e-5)
    np.testing.assert_allclose(np.asarray(z2), np.asarray(ref_z), rtol=1e-4, atol=2e-5)
    np.testing.assert_allclose(np.asarray(cz2), np.asarray(ref_cz), rtol=1e-4, atol=2e-5)

    print("KERNEL_OK")
</pallas_src>

<mosaic_0001>
module attributes {stable_mosaic.version = 11 : i64} {
  func.func @kernel(%arg0: i32, %arg1: memref<64x11xf32, #tpu.memory_space<vmem>>, %arg2: memref<8x34xf32, #tpu.memory_space<vmem>>, %arg3: memref<8x32xf32, #tpu.memory_space<vmem>>, %arg4: memref<11x128xf32, #tpu.memory_space<vmem>>, %arg5: memref<34x128xf32, #tpu.memory_space<vmem>>, %arg6: memref<32x128xf32, #tpu.memory_space<vmem>>, %arg7: memref<1x128xf32, #tpu.memory_space<vmem>>, %arg8: memref<8x8x34xf32, #tpu.memory_space<vmem>>, %arg9: memref<8x34xf32, #tpu.memory_space<vmem>>, %arg10: memref<8x32xf32, #tpu.memory_space<vmem>>, %arg11: memref<64x128xf32, #tpu.memory_space<vmem>>) attributes {dimension_semantics = [#tpu.dimension_semantics<arbitrary>], iteration_bounds = array<i64: 1>, scalar_prefetch = 0 : i64, scratch_operands = 1 : i64, tpu.core_type = #tpu.core_type<tc>, window_params = [{transform_indices = @transform_0, window_bounds = array<i64: 64, 11>}, {pipeline_mode = #tpu.pipeline_mode<synchronous>, transform_indices = @transform_1, window_bounds = array<i64: 8, 34>}, {pipeline_mode = #tpu.pipeline_mode<synchronous>, transform_indices = @transform_2, window_bounds = array<i64: 8, 32>}, {pipeline_mode = #tpu.pipeline_mode<synchronous>, transform_indices = @transform_3, window_bounds = array<i64: 11, 128>}, {pipeline_mode = #tpu.pipeline_mode<synchronous>, transform_indices = @transform_4, window_bounds = array<i64: 34, 128>}, {pipeline_mode = #tpu.pipeline_mode<synchronous>, transform_indices = @transform_5, window_bounds = array<i64: 32, 128>}, {pipeline_mode = #tpu.pipeline_mode<synchronous>, transform_indices = @transform_6, window_bounds = array<i64: 1, 128>}, {transform_indices = @transform_7, window_bounds = array<i64: 8, 8, 34>}, {pipeline_mode = #tpu.pipeline_mode<synchronous>, transform_indices = @transform_8, window_bounds = array<i64: 8, 34>}, {pipeline_mode = #tpu.pipeline_mode<synchronous>, transform_indices = @transform_9, window_bounds = array<i64: 8, 32>}]} {
    %c0_i32 = arith.constant 0 : i32
    %0 = arith.cmpi eq, %arg0, %c0_i32 : i32
    %1 = arith.extui %0 : i1 to i32
    %c0_i32_0 = arith.constant 0 : i32
    %2 = arith.cmpi ne, %1, %c0_i32_0 : i32
    scf.if %2 {
      %c0_109 = arith.constant 0 : index
      %c0_110 = arith.constant 0 : index
      %446 = vector.load %arg2[%c0_109, %c0_110] : memref<8x34xf32, #tpu.memory_space<vmem>>, vector<8x34xf32>
      %c0_111 = arith.constant 0 : index
      %c0_112 = arith.constant 0 : index
      %447 = vector.load %arg9[%c0_111, %c0_112] : memref<8x34xf32, #tpu.memory_space<vmem>>, vector<8x34xf32>
      tpu.vector_store %arg9[%c0_111, %c0_112], %446 {strides = array<i32>} : memref<8x34xf32, #tpu.memory_space<vmem>>, vector<8x34xf32>,
      %c0_113 = arith.constant 0 : index
      %c0_114 = arith.constant 0 : index
      %448 = vector.load %arg3[%c0_113, %c0_114] : memref<8x32xf32, #tpu.memory_space<vmem>>, vector<8x32xf32>
      %c0_115 = arith.constant 0 : index
      %c0_116 = arith.constant 0 : index
      %449 = vector.load %arg10[%c0_115, %c0_116] : memref<8x32xf32, #tpu.memory_space<vmem>>, vector<8x32xf32>
      tpu.vector_store %arg10[%c0_115, %c0_116], %448 {strides = array<i32>} : memref<8x32xf32, #tpu.memory_space<vmem>>, vector<8x32xf32>,
    } else {
    }
    %c0 = arith.constant 0 : index
    %c0_1 = arith.constant 0 : index
    %3 = vector.load %arg4[%c0, %c0_1] : memref<11x128xf32, #tpu.memory_space<vmem>>, vector<11x128xf32>
    %c0_2 = arith.constant 0 : index
    %c0_3 = arith.constant 0 : index
    %4 = vector.load %arg1[%c0_2, %c0_3] : memref<64x11xf32, #tpu.memory_space<vmem>>, vector<64x11xf32>
    %cst = arith.constant dense<0.000000e+00> : vector<64x128xf32>
    %5 = tpu.matmul %4, %3, %cst {dimension_numbers = #tpu.dot_dimension_numbers<[1], [0], [0], [1], [0, 0, 1, 1], [], []>} : vector<64x11xf32>, vector<11x128xf32>, vector<64x128xf32> -> vector<64x128xf32>
    %c0_4 = arith.constant 0 : index
    %c0_5 = arith.constant 0 : index
    %6 = vector.load %arg11[%c0_4, %c0_5] : memref<64x128xf32, #tpu.memory_space<vmem>>, vector<64x128xf32>
    tpu.vector_store %arg11[%c0_4, %c0_5], %5 {strides = array<i32>} : memref<64x128xf32, #tpu.memory_space<vmem>>, vector<64x128xf32>,
    %c0_6 = arith.constant 0 : index
    %c0_7 = arith.constant 0 : index
    %7 = vector.load %arg5[%c0_6, %c0_7] : memref<34x128xf32, #tpu.memory_space<vmem>>, vector<34x128xf32>
    %c0_8 = arith.constant 0 : index
    %c0_9 = arith.constant 0 : index
    %8 = vector.load %arg6[%c0_8, %c0_9] : memref<32x128xf32, #tpu.memory_space<vmem>>, vector<32x128xf32>
    %c0_10 = arith.constant 0 : index
    %c0_11 = arith.constant 0 : index
    %9 = vector.load %arg7[%c0_10, %c0_11] : memref<1x128xf32, #tpu.memory_space<vmem>>, vector<1x128xf32>
    %c0_12 = arith.constant 0 : index
    %c0_13 = arith.constant 0 : index
    %10 = vector.load %arg9[%c0_12, %c0_13] : memref<8x34xf32, #tpu.memory_space<vmem>>, vector<8x34xf32>
    %c0_14 = arith.constant 0 : index
    %c0_15 = arith.constant 0 : index
    %11 = vector.load %arg10[%c0_14, %c0_15] : memref<8x32xf32, #tpu.memory_space<vmem>>, vector<8x32xf32>
    %c0_i32_16 = arith.constant 0 : i32
    %c8_i32 = arith.constant 8 : i32
    %12 = arith.muli %c0_i32_16, %c8_i32 : i32
    %13 = tpu.assume_multiple %12, 8 : i32
    %14 = arith.index_cast %13 : i32 to index
    %c0_17 = arith.constant 0 : index
    %15 = vector.load %arg1[%14, %c0_17] : memref<64x11xf32, #tpu.memory_space<vmem>>, vector<8x11xf32>
    %16 = arith.index_cast %13 : i32 to index
    %c0_18 = arith.constant 0 : index
    %17 = vector.load %arg11[%16, %c0_18] : memref<64x128xf32, #tpu.memory_space<vmem>>, vector<8x128xf32>
    %cst_19 = arith.constant dense<0.000000e+00> : vector<8x128xf32>
    %18 = tpu.matmul %10, %7, %cst_19 {dimension_numbers = #tpu.dot_dimension_numbers<[1], [0], [0], [1], [0, 0, 1, 1], [], []>} : vector<8x34xf32>, vector<34x128xf32>, vector<8x128xf32> -> vector<8x128xf32>
    %19 = arith.addf %17, %18 : vector<8x128xf32>
    %20 = vector.extract_strided_slice %19 {offsets = [0, 0], sizes = [8, 96], strides = [1, 1]} : vector<8x128xf32> to vector<8x96xf32>
    %21 = arith.negf %20 : vector<8x96xf32>
    %22 = math.exp %21 : vector<8x96xf32>
    %cst_20 = arith.constant 1.000000e+00 : f32
    %23 = vector.broadcast %cst_20 : f32 to vector<8x96xf32>
    %24 = arith.addf %23, %22 : vector<8x96xf32>
    %25 = arith.divf %23, %24 : vector<8x96xf32>
    %26 = vector.extract_strided_slice %25 {offsets = [0, 0], sizes = [8, 32], strides = [1, 1]} : vector<8x96xf32> to vector<8x32xf32>
    %27 = vector.extract_strided_slice %25 {offsets = [0, 32], sizes = [8, 32], strides = [1, 1]} : vector<8x96xf32> to vector<8x32xf32>
    %28 = vector.extract_strided_slice %25 {offsets = [0, 64], sizes = [8, 32], strides = [1, 1]} : vector<8x96xf32> to vector<8x32xf32>
    %29 = vector.extract_strided_slice %19 {offsets = [0, 96], sizes = [8, 32], strides = [1, 1]} : vector<8x128xf32> to vector<8x32xf32>
    %30 = math.tanh %29 : vector<8x32xf32>
    %31 = arith.mulf %27, %11 : vector<8x32xf32>
    %32 = arith.mulf %26, %30 : vector<8x32xf32>
    %33 = arith.addf %31, %32 : vector<8x32xf32>
    %34 = math.tanh %33 : vector<8x32xf32>
    %35 = arith.mulf %28, %34 : vector<8x32xf32>
    %36 = vector.extract_strided_slice %10 {offsets = [0, 0], sizes = [8, 2], strides = [1, 1]} : vector<8x34xf32> to vector<8x2xf32>
    %37 = vector.extract_strided_slice %15 {offsets = [0, 0], sizes = [8, 2], strides = [1, 1]} : vector<8x11xf32> to vector<8x2xf32>
    %38 = vector.extract_strided_slice %36 {offsets = [0, 0], sizes = [8, 1], strides = [1, 1]} : vector<8x2xf32> to vector<8x1xf32>
    %39 = vector.extract_strided_slice %36 {offsets = [0, 1], sizes = [8, 1], strides = [1, 1]} : vector<8x2xf32> to vector<8x1xf32>
    %40 = arith.subf %38, %39 : vector<8x1xf32>
    %cst_21 = arith.constant 1.500000e+00 : f32
    %41 = vector.broadcast %cst_21 : f32 to vector<8x1xf32>
    %42 = arith.mulf %41, %40 : vector<8x1xf32>
    %cst_22 = arith.constant 0.666666686 : f32
    %43 = vector.broadcast %cst_22 : f32 to vector<8x1xf32>
    %44 = arith.mulf %43, %38 : vector<8x1xf32>
    %45 = tpu.concatenate %42, %44 in 1 : vector<8x1xf32>, vector<8x1xf32> -> vector<8x2xf32>
    %46 = arith.mulf %37, %45 : vector<8x2xf32>
    %47 = arith.addf %36, %46 : vector<8x2xf32>
    %cst_23 = arith.constant dense<0.000000e+00> : vector<8x128xf32>
    %48 = tpu.matmul %35, %8, %cst_23 {dimension_numbers = #tpu.dot_dimension_numbers<[1], [0], [0], [1], [0, 0, 1, 1], [], []>} : vector<8x32xf32>, vector<32x128xf32>, vector<8x128xf32> -> vector<8x128xf32>
    %49 = vector.broadcast %9 : vector<1x128xf32> to vector<8x128xf32>
    %50 = arith.addf %48, %49 : vector<8x128xf32>
    %51 = vector.extract_strided_slice %50 {offsets = [0, 0], sizes = [8, 2], strides = [1, 1]} : vector<8x128xf32> to vector<8x2xf32>
    %52 = arith.negf %51 : vector<8x2xf32>
    %53 = math.exp %52 : vector<8x2xf32>
    %cst_24 = arith.constant 1.000000e+00 : f32
    %54 = vector.broadcast %cst_24 : f32 to vector<8x2xf32>
    %55 = arith.addf %54, %53 : vector<8x2xf32>
    %56 = arith.divf %54, %55 : vector<8x2xf32>
    %57 = vector.extract_strided_slice %50 {offsets = [0, 2], sizes = [8, 2], strides = [1, 1]} : vector<8x128xf32> to vector<8x2xf32>
    %58 = arith.subf %57, %47 : vector<8x2xf32>
    %59 = arith.mulf %56, %58 : vector<8x2xf32>
    %60 = arith.addf %47, %59 : vector<8x2xf32>
    %61 = tpu.concatenate %60, %35 in 1 : vector<8x2xf32>, vector<8x32xf32> -> vector<8x34xf32>
    %62 = arith.index_cast %c0_i32_16 : i32 to index
    %c0_25 = arith.constant 0 : index
    %c0_26 = arith.constant 0 : index
    %63 = vector.load %arg8[%62, %c0_25, %c0_26] : memref<8x8x34xf32, #tpu.memory_space<vmem>>, vector<1x8x34xf32>
    %64 = vector.shape_cast %63 : vector<1x8x34xf32> to vector<8x34xf32>
    %65 = vector.shape_cast %61 : vector<8x34xf32> to vector<1x8x34xf32>
    tpu.vector_store %arg8[%62, %c0_25, %c0_26], %65 {strides = array<i32>} : memref<8x8x34xf32, #tpu.memory_space<vmem>>, vector<1x8x34xf32>,
    %c1_i32 = arith.constant 1 : i32
    %c8_i32_27 = arith.constant 8 : i32
    %66 = arith.muli %c1_i32, %c8_i32_27 : i32
    %67 = tpu.assume_multiple %66, 8 : i32
    %68 = arith.index_cast %67 : i32 to index
    %c0_28 = arith.constant 0 : index
    %69 = vector.load %arg1[%68, %c0_28] : memref<64x11xf32, #tpu.memory_space<vmem>>, vector<8x11xf32>
    %70 = arith.index_cast %67 : i32 to index
    %c0_29 = arith.constant 0 : index
    %71 = vector.load %arg11[%70, %c0_29] : memref<64x128xf32, #tpu.memory_space<vmem>>, vector<8x128xf32>
    %cst_30 = arith.constant dense<0.000000e+00> : vector<8x128xf32>
    %72 = tpu.matmul %61, %7, %cst_30 {dimension_numbers = #tpu.dot_dimension_numbers<[1], [0], [0], [1], [0, 0, 1, 1], [], []>} : vector<8x34xf32>, vector<34x128xf32>, vector<8x128xf32> -> vector<8x128xf32>
    %73 = arith.addf %71, %72 : vector<8x128xf32>
    %74 = vector.extract_strided_slice %73 {offsets = [0, 0], sizes = [8, 96], strides = [1, 1]} : vector<8x128xf32> to vector<8x96xf32>
    %75 = arith.negf %74 : vector<8x96xf32>
    %76 = math.exp %75 : vector<8x96xf32>
    %cst_31 = arith.constant 1.000000e+00 : f32
    %77 = vector.broadcast %cst_31 : f32 to vector<8x96xf32>
    %78 = arith.addf %77, %76 : vector<8x96xf32>
    %79 = arith.divf %77, %78 : vector<8x96xf32>
    %80 = vector.extract_strided_slice %79 {offsets = [0, 0], sizes = [8, 32], strides = [1, 1]} : vector<8x96xf32> to vector<8x32xf32>
    %81 = vector.extract_strided_slice %79 {offsets = [0, 32], sizes = [8, 32], strides = [1, 1]} : vector<8x96xf32> to vector<8x32xf32>
    %82 = vector.extract_strided_slice %79 {offsets = [0, 64], sizes = [8, 32], strides = [1, 1]} : vector<8x96xf32> to vector<8x32xf32>
    %83 = vector.extract_strided_slice %73 {offsets = [0, 96], sizes = [8, 32], strides = [1, 1]} : vector<8x128xf32> to vector<8x32xf32>
    %84 = math.tanh %83 : vector<8x32xf32>
    %85 = arith.mulf %81, %33 : vector<8x32xf32>
    %86 = arith.mulf %80, %84 : vector<8x32xf32>
    %87 = arith.addf %85, %86 : vector<8x32xf32>
    %88 = math.tanh %87 : vector<8x32xf32>
    %89 = arith.mulf %82, %88 : vector<8x32xf32>
    %90 = vector.extract_strided_slice %61 {offsets = [0, 0], sizes = [8, 2], strides = [1, 1]} : vector<8x34xf32> to vector<8x2xf32>
    %91 = vector.extract_strided_slice %69 {offsets = [0, 0], sizes = [8, 2], strides = [1, 1]} : vector<8x11xf32> to vector<8x2xf32>
    %92 = vector.extract_strided_slice %90 {offsets = [0, 0], sizes = [8, 1], strides = [1, 1]} : vector<8x2xf32> to vector<8x1xf32>
    %93 = vector.extract_strided_slice %90 {offsets = [0, 1], sizes = [8, 1], strides = [1, 1]} : vector<8x2xf32> to vector<8x1xf32>
    %94 = arith.subf %92, %93 : vector<8x1xf32>
    %cst_32 = arith.constant 1.500000e+00 : f32
    %95 = vector.broadcast %cst_32 : f32 to vector<8x1xf32>
    %96 = arith.mulf %95, %94 : vector<8x1xf32>
    %cst_33 = arith.constant 0.666666686 : f32
    %97 = vector.broadcast %cst_33 : f32 to vector<8x1xf32>
    %98 = arith.mulf %97, %92 : vector<8x1xf32>
    %99 = tpu.concatenate %96, %98 in 1 : vector<8x1xf32>, vector<8x1xf32> -> vector<8x2xf32>
    %100 = arith.mulf %91, %99 : vector<8x2xf32>
    %101 = arith.addf %90, %100 : vector<8x2xf32>
    %cst_34 = arith.constant dense<0.000000e+00> : vector<8x128xf32>
    %102 = tpu.matmul %89, %8, %cst_34 {dimension_numbers = #tpu.dot_dimension_numbers<[1], [0], [0], [1], [0, 0, 1, 1], [], []>} : vector<8x32xf32>, vector<32x128xf32>, vector<8x128xf32> -> vector<8x128xf32>
    %103 = vector.broadcast %9 : vector<1x128xf32> to vector<8x128xf32>
    %104 = arith.addf %102, %103 : vector<8x128xf32>
    %105 = vector.extract_strided_slice %104 {offsets = [0, 0], sizes = [8, 2], strides = [1, 1]} : vector<8x128xf32> to vector<8x2xf32>
    %106 = arith.negf %105 : vector<8x2xf32>
    %107 = math.exp %106 : vector<8x2xf32>
    %cst_35 = arith.constant 1.000000e+00 : f32
    %108 = vector.broadcast %cst_35 : f32 to vector<8x2xf32>
    %109 = arith.addf %108, %107 : vector<8x2xf32>
    %110 = arith.divf %108, %109 : vector<8x2xf32>
    %111 = vector.extract_strided_slice %104 {offsets = [0, 2], sizes = [8, 2], strides = [1, 1]} : vector<8x128xf32> to vector<8x2xf32>
    %112 = arith.subf %111, %101 : vector<8x2xf32>
    %113 = arith.mulf %110, %112 : vector<8x2xf32>
    %114 = arith.addf %101, %113 : vector<8x2xf32>
    %115 = tpu.concatenate %114, %89 in 1 : vector<8x2xf32>, vector<8x32xf32> -> vector<8x34xf32>
    %116 = arith.index_cast %c1_i32 : i32 to index
    %c0_36 = arith.constant 0 : index
    %c0_37 = arith.constant 0 : index
    %117 = vector.load %arg8[%116, %c0_36, %c0_37] : memref<8x8x34xf32, #tpu.memory_space<vmem>>, vector<1x8x34xf32>
    %118 = vector.shape_cast %117 : vector<1x8x34xf32> to vector<8x34xf32>
    %119 = vector.shape_cast %115 : vector<8x34xf32> to vector<1x8x34xf32>
    tpu.vector_store %arg8[%116, %c0_36, %c0_37], %119 {strides = array<i32>} : memref<8x8x34xf32, #tpu.memory_space<vmem>>, vector<1x8x34xf32>,
    %c2_i32 = arith.constant 2 : i32
    %c8_i32_38 = arith.constant 8 : i32
    %120 = arith.muli %c2_i32, %c8_i32_38 : i32
    %121 = tpu.assume_multiple %120, 8 : i32
    %122 = arith.index_cast %121 : i32 to index
    %c0_39 = arith.constant 0 : index
    %123 = vector.load %arg1[%122, %c0_39] : memref<64x11xf32, #tpu.memory_space<vmem>>, vector<8x11xf32>
    %124 = arith.index_cast %121 : i32 to index
    %c0_40 = arith.constant 0 : index
    %125 = vector.load %arg11[%124, %c0_40] : memref<64x128xf32, #tpu.memory_space<vmem>>, vector<8x128xf32>
    %cst_41 = arith.constant dense<0.000000e+00> : vector<8x128xf32>
    %126 = tpu.matmul %115, %7, %cst_41 {dimension_numbers = #tpu.dot_dimension_numbers<[1], [0], [0], [1], [0, 0, 1, 1], [], []>} : vector<8x34xf32>, vector<34x128xf32>, vector<8x128xf32> -> vector<8x128xf32>
    %127 = arith.addf %125, %126 : vector<8x128xf32>
    %128 = vector.extract_strided_slice %127 {offsets = [0, 0], sizes = [8, 96], strides = [1, 1]} : vector<8x128xf32> to vector<8x96xf32>
    %129 = arith.negf %128 : vector<8x96xf32>
    %130 = math.exp %129 : vector<8x96xf32>
    %cst_42 = arith.constant 1.000000e+00 : f32
    %131 = vector.broadcast %cst_42 : f32 to vector<8x96xf32>
    %132 = arith.addf %131, %130 : vector<8x96xf32>
    %133 = arith.divf %131, %132 : vector<8x96xf32>
    %134 = vector.extract_strided_slice %133 {offsets = [0, 0], sizes = [8, 32], strides = [1, 1]} : vector<8x96xf32> to vector<8x32xf32>
    %135 = vector.extract_strided_slice %133 {offsets = [0, 32], sizes = [8, 32], strides = [1, 1]} : vector<8x96xf32> to vector<8x32xf32>
    %136 = vector.extract_strided_slice %133 {offsets = [0, 64], sizes = [8, 32], strides = [1, 1]} : vector<8x96xf32> to vector<8x32xf32>
    %137 = vector.extract_strided_slice %127 {offsets = [0, 96], sizes = [8, 32], strides = [1, 1]} : vector<8x128xf32> to vector<8x32xf32>
    %138 = math.tanh %137 : vector<8x32xf32>
    %139 = arith.mulf %135, %87 : vector<8x32xf32>
    %140 = arith.mulf %134, %138 : vector<8x32xf32>
    %141 = arith.addf %139, %140 : vector<8x32xf32>
    %142 = math.tanh %141 : vector<8x32xf32>
    %143 = arith.mulf %136, %142 : vector<8x32xf32>
    %144 = vector.extract_strided_slice %115 {offsets = [0, 0], sizes = [8, 2], strides = [1, 1]} : vector<8x34xf32> to vector<8x2xf32>
    %145 = vector.extract_strided_slice %123 {offsets = [0, 0], sizes = [8, 2], strides = [1, 1]} : vector<8x11xf32> to vector<8x2xf32>
    %146 = vector.extract_strided_slice %144 {offsets = [0, 0], sizes = [8, 1], strides = [1, 1]} : vector<8x2xf32> to vector<8x1xf32>
    %147 = vector.extract_strided_slice %144 {offsets = [0, 1], sizes = [8, 1], strides = [1, 1]} : vector<8x2xf32> to vector<8x1xf32>
    %148 = arith.subf %146, %147 : vector<8x1xf32>
    %cst_43 = arith.constant 1.500000e+00 : f32
    %149 = vector.broadcast %cst_43 : f32 to vector<8x1xf32>
    %150 = arith.mulf %149, %148 : vector<8x1xf32>
    %cst_44 = arith.constant 0.666666686 : f32
    %151 = vector.broadcast %cst_44 : f32 to vector<8x1xf32>
    %152 = arith.mulf %151, %146 : vector<8x1xf32>
    %153 = tpu.concatenate %150, %152 in 1 : vector<8x1xf32>, vector<8x1xf32> -> vector<8x2xf32>
    %154 = arith.mulf %145, %153 : vector<8x2xf32>
    %155 = arith.addf %144, %154 : vector<8x2xf32>
    %cst_45 = arith.constant dense<0.000000e+00> : vector<8x128xf32>
    %156 = tpu.matmul %143, %8, %cst_45 {dimension_numbers = #tpu.dot_dimension_numbers<[1], [0], [0], [1], [0, 0, 1, 1], [], []>} : vector<8x32xf32>, vector<32x128xf32>, vector<8x128xf32> -> vector<8x128xf32>
    %157 = vector.broadcast %9 : vector<1x128xf32> to vector<8x128xf32>
    %158 = arith.addf %156, %157 : vector<8x128xf32>
    %159 = vector.extract_strided_slice %158 {offsets = [0, 0], sizes = [8, 2], strides = [1, 1]} : vector<8x128xf32> to vector<8x2xf32>
    %160 = arith.negf %159 : vector<8x2xf32>
    %161 = math.exp %160 : vector<8x2xf32>
    %cst_46 = arith.constant 1.000000e+00 : f32
    %162 = vector.broadcast %cst_46 : f32 to vector<8x2xf32>
    %163 = arith.addf %162, %161 : vector<8x2xf32>
    %164 = arith.divf %162, %163 : vector<8x2xf32>
    %165 = vector.extract_strided_slice %158 {offsets = [0, 2], sizes = [8, 2], strides = [1, 1]} : vector<8x128xf32> to vector<8x2xf32>
    %166 = arith.subf %165, %155 : vector<8x2xf32>
    %167 = arith.mulf %164, %166 : vector<8x2xf32>
    %168 = arith.addf %155, %167 : vector<8x2xf32>
    %169 = tpu.concatenate %168, %143 in 1 : vector<8x2xf32>, vector<8x32xf32> -> vector<8x34xf32>
    %170 = arith.index_cast %c2_i32 : i32 to index
    %c0_47 = arith.constant 0 : index
    %c0_48 = arith.constant 0 : index
    %171 = vector.load %arg8[%170, %c0_47, %c0_48] : memref<8x8x34xf32, #tpu.memory_space<vmem>>, vector<1x8x34xf32>
    %172 = vector.shape_cast %171 : vector<1x8x34xf32> to vector<8x34xf32>
    %173 = vector.shape_cast %169 : vector<8x34xf32> to vector<1x8x34xf32>
    tpu.vector_store %arg8[%170, %c0_47, %c0_48], %173 {strides = array<i32>} : memref<8x8x34xf32, #tpu.memory_space<vmem>>, vector<1x8x34xf32>,
    %c3_i32 = arith.constant 3 : i32
    %c8_i32_49 = arith.constant 8 : i32
    %174 = arith.muli %c3_i32, %c8_i32_49 : i32
    %175 = tpu.assume_multiple %174, 8 : i32
    %176 = arith.index_cast %175 : i32 to index
    %c0_50 = arith.constant 0 : index
    %177 = vector.load %arg1[%176, %c0_50] : memref<64x11xf32, #tpu.memory_space<vmem>>, vector<8x11xf32>
    %178 = arith.index_cast %175 : i32 to index
    %c0_51 = arith.constant 0 : index
    %179 = vector.load %arg11[%178, %c0_51] : memref<64x128xf32, #tpu.memory_space<vmem>>, vector<8x128xf32>
    %cst_52 = arith.constant dense<0.000000e+00> : vector<8x128xf32>
    %180 = tpu.matmul %169, %7, %cst_52 {dimension_numbers = #tpu.dot_dimension_numbers<[1], [0], [0], [1], [0, 0, 1, 1], [], []>} : vector<8x34xf32>, vector<34x128xf32>, vector<8x128xf32> -> vector<8x128xf32>
    %181 = arith.addf %179, %180 : vector<8x128xf32>
    %182 = vector.extract_strided_slice %181 {offsets = [0, 0], sizes = [8, 96], strides = [1, 1]} : vector<8x128xf32> to vector<8x96xf32>
    %183 = arith.negf %182 : vector<8x96xf32>
    %184 = math.exp %183 : vector<8x96xf32>
    %cst_53 = arith.constant 1.000000e+00 : f32
    %185 = vector.broadcast %cst_53 : f32 to vector<8x96xf32>
    %186 = arith.addf %185, %184 : vector<8x96xf32>
    %187 = arith.divf %185, %186 : vector<8x96xf32>
    %188 = vector.extract_strided_slice %187 {offsets = [0, 0], sizes = [8, 32], strides = [1, 1]} : vector<8x96xf32> to vector<8x32xf32>
    %189 = vector.extract_strided_slice %187 {offsets = [0, 32], sizes = [8, 32], strides = [1, 1]} : vector<8x96xf32> to vector<8x32xf32>
    %190 = vector.extract_strided_slice %187 {offsets = [0, 64], sizes = [8, 32], strides = [1, 1]} : vector<8x96xf32> to vector<8x32xf32>
    %191 = vector.extract_strided_slice %181 {offsets = [0, 96], sizes = [8, 32], strides = [1, 1]} : vector<8x128xf32> to vector<8x32xf32>
    %192 = math.tanh %191 : vector<8x32xf32>
    %193 = arith.mulf %189, %141 : vector<8x32xf32>
    %194 = arith.mulf %188, %192 : vector<8x32xf32>
    %195 = arith.addf %193, %194 : vector<8x32xf32>
    %196 = math.tanh %195 : vector<8x32xf32>
    %197 = arith.mulf %190, %196 : vector<8x32xf32>
    %198 = vector.extract_strided_slice %169 {offsets = [0, 0], sizes = [8, 2], strides = [1, 1]} : vector<8x34xf32> to vector<8x2xf32>
    %199 = vector.extract_strided_slice %177 {offsets = [0, 0], sizes = [8, 2], strides = [1, 1]} : vector<8x11xf32> to vector<8x2xf32>
    %200 = vector.extract_strided_slice %198 {offsets = [0, 0], sizes = [8, 1], strides = [1, 1]} : vector<8x2xf32> to vector<8x1xf32>
    %201 = vector.extract_strided_slice %198 {offsets = [0, 1], sizes = [8, 1], strides = [1, 1]} : vector<8x2xf32> to vector<8x1xf32>
    %202 = arith.subf %200, %201 : vector<8x1xf32>
    %cst_54 = arith.constant 1.500000e+00 : f32
    %203 = vector.broadcast %cst_54 : f32 to vector<8x1xf32>
    %204 = arith.mulf %203, %202 : vector<8x1xf32>
    %cst_55 = arith.constant 0.666666686 : f32
    %205 = vector.broadcast %cst_55 : f32 to vector<8x1xf32>
    %206 = arith.mulf %205, %200 : vector<8x1xf32>
    %207 = tpu.concatenate %204, %206 in 1 : vector<8x1xf32>, vector<8x1xf32> -> vector<8x2xf32>
    %208 = arith.mulf %199, %207 : vector<8x2xf32>
    %209 = arith.addf %198, %208 : vector<8x2xf32>
    %cst_56 = arith.constant dense<0.000000e+00> : vector<8x128xf32>
    %210 = tpu.matmul %197, %8, %cst_56 {dimension_numbers = #tpu.dot_dimension_numbers<[1], [0], [0], [1], [0, 0, 1, 1], [], []>} : vector<8x32xf32>, vector<32x128xf32>, vector<8x128xf32> -> vector<8x128xf32>
    %211 = vector.broadcast %9 : vector<1x128xf32> to vector<8x128xf32>
    %212 = arith.addf %210, %211 : vector<8x128xf32>
    %213 = vector.extract_strided_slice %212 {offsets = [0, 0], sizes = [8, 2], strides = [1, 1]} : vector<8x128xf32> to vector<8x2xf32>
    %214 = arith.negf %213 : vector<8x2xf32>
    %215 = math.exp %214 : vector<8x2xf32>
    %cst_57 = arith.constant 1.000000e+00 : f32
    %216 = vector.broadcast %cst_57 : f32 to vector<8x2xf32>
    %217 = arith.addf %216, %215 : vector<8x2xf32>
    %218 = arith.divf %216, %217 : vector<8x2xf32>
    %219 = vector.extract_strided_slice %212 {offsets = [0, 2], sizes = [8, 2], strides = [1, 1]} : vector<8x128xf32> to vector<8x2xf32>
    %220 = arith.subf %219, %209 : vector<8x2xf32>
    %221 = arith.mulf %218, %220 : vector<8x2xf32>
    %222 = arith.addf %209, %221 : vector<8x2xf32>
    %223 = tpu.concatenate %222, %197 in 1 : vector<8x2xf32>, vector<8x32xf32> -> vector<8x34xf32>
    %224 = arith.index_cast %c3_i32 : i32 to index
    %c0_58 = arith.constant 0 : index
    %c0_59 = arith.constant 0 : index
    %225 = vector.load %arg8[%224, %c0_58, %c0_59] : memref<8x8x34xf32, #tpu.memory_space<vmem>>, vector<1x8x34xf32>
    %226 = vector.shape_cast %225 : vector<1x8x34xf32> to vector<8x34xf32>
    %227 = vector.shape_cast %223 : vector<8x34xf32> to vector<1x8x34xf32>
    tpu.vector_store %arg8[%224, %c0_58, %c0_59], %227 {strides = array<i32>} : memref<8x8x34xf32, #tpu.memory_space<vmem>>, vector<1x8x34xf32>,
    %c4_i32 = arith.constant 4 : i32
    %c8_i32_60 = arith.constant 8 : i32
    %228 = arith.muli %c4_i32, %c8_i32_60 : i32
    %229 = tpu.assume_multiple %228, 8 : i32
    %230 = arith.index_cast %229 : i32 to index
    %c0_61 = arith.constant 0 : index
    %231 = vector.load %arg1[%230, %c0_61] : memref<64x11xf32, #tpu.memory_space<vmem>>, vector<8x11xf32>
    %232 = arith.index_cast %229 : i32 to index
    %c0_62 = arith.constant 0 : index
    %233 = vector.load %arg11[%232, %c0_62] : memref<64x128xf32, #tpu.memory_space<vmem>>, vector<8x128xf32>
    %cst_63 = arith.constant dense<0.000000e+00> : vector<8x128xf32>
    %234 = tpu.matmul %223, %7, %cst_63 {dimension_numbers = #tpu.dot_dimension_numbers<[1], [0], [0], [1], [0, 0, 1, 1], [], []>} : vector<8x34xf32>, vector<34x128xf32>, vector<8x128xf32> -> vector<8x128xf32>
    %235 = arith.addf %233, %234 : vector<8x128xf32>
    %236 = vector.extract_strided_slice %235 {offsets = [0, 0], sizes = [8, 96], strides = [1, 1]} : vector<8x128xf32> to vector<8x96xf32>
    %237 = arith.negf %236 : vector<8x96xf32>
    %238 = math.exp %237 : vector<8x96xf32>
    %cst_64 = arith.constant 1.000000e+00 : f32
    %239 = vector.broadcast %cst_64 : f32 to vector<8x96xf32>
    %240 = arith.addf %239, %238 : vector<8x96xf32>
    %241 = arith.divf %239, %240 : vector<8x96xf32>
    %242 = vector.extract_strided_slice %241 {offsets = [0, 0], sizes = [8, 32], strides = [1, 1]} : vector<8x96xf32> to vector<8x32xf32>
    %243 = vector.extract_strided_slice %241 {offsets = [0, 32], sizes = [8, 32], strides = [1, 1]} : vector<8x96xf32> to vector<8x32xf32>
    %244 = vector.extract_strided_slice %241 {offsets = [0, 64], sizes = [8, 32], strides = [1, 1]} : vector<8x96xf32> to vector<8x32xf32>
    %245 = vector.extract_strided_slice %235 {offsets = [0, 96], sizes = [8, 32], strides = [1, 1]} : vector<8x128xf32> to vector<8x32xf32>
    %246 = math.tanh %245 : vector<8x32xf32>
    %247 = arith.mulf %243, %195 : vector<8x32xf32>
    %248 = arith.mulf %242, %246 : vector<8x32xf32>
    %249 = arith.addf %247, %248 : vector<8x32xf32>
    %250 = math.tanh %249 : vector<8x32xf32>
    %251 = arith.mulf %244, %250 : vector<8x32xf32>
    %252 = vector.extract_strided_slice %223 {offsets = [0, 0], sizes = [8, 2], strides = [1, 1]} : vector<8x34xf32> to vector<8x2xf32>
    %253 = vector.extract_strided_slice %231 {offsets = [0, 0], sizes = [8, 2], strides = [1, 1]} : vector<8x11xf32> to vector<8x2xf32>
    %254 = vector.extract_strided_slice %252 {offsets = [0, 0], sizes = [8, 1], strides = [1, 1]} : vector<8x2xf32> to vector<8x1xf32>
    %255 = vector.extract_strided_slice %252 {offsets = [0, 1], sizes = [8, 1], strides = [1, 1]} : vector<8x2xf32> to vector<8x1xf32>
    %256 = arith.subf %254, %255 : vector<8x1xf32>
    %cst_65 = arith.constant 1.500000e+00 : f32
    %257 = vector.broadcast %cst_65 : f32 to vector<8x1xf32>
    %258 = arith.mulf %257, %256 : vector<8x1xf32>
    %cst_66 = arith.constant 0.666666686 : f32
    %259 = vector.broadcast %cst_66 : f32 to vector<8x1xf32>
    %260 = arith.mulf %259, %254 : vector<8x1xf32>
    %261 = tpu.concatenate %258, %260 in 1 : vector<8x1xf32>, vector<8x1xf32> -> vector<8x2xf32>
    %262 = arith.mulf %253, %261 : vector<8x2xf32>
    %263 = arith.addf %252, %262 : vector<8x2xf32>
    %cst_67 = arith.constant dense<0.000000e+00> : vector<8x128xf32>
    %264 = tpu.matmul %251, %8, %cst_67 {dimension_numbers = #tpu.dot_dimension_numbers<[1], [0], [0], [1], [0, 0, 1, 1], [], []>} : vector<8x32xf32>, vector<32x128xf32>, vector<8x128xf32> -> vector<8x128xf32>
    %265 = vector.broadcast %9 : vector<1x128xf32> to vector<8x128xf32>
    %266 = arith.addf %264, %265 : vector<8x128xf32>
    %267 = vector.extract_strided_slice %266 {offsets = [0, 0], sizes = [8, 2], strides = [1, 1]} : vector<8x128xf32> to vector<8x2xf32>
    %268 = arith.negf %267 : vector<8x2xf32>
    %269 = math.exp %268 : vector<8x2xf32>
    %cst_68 = arith.constant 1.000000e+00 : f32
    %270 = vector.broadcast %cst_68 : f32 to vector<8x2xf32>
    %271 = arith.addf %270, %269 : vector<8x2xf32>
    %272 = arith.divf %270, %271 : vector<8x2xf32>
    %273 = vector.extract_strided_slice %266 {offsets = [0, 2], sizes = [8, 2], strides = [1, 1]} : vector<8x128xf32> to vector<8x2xf32>
    %274 = arith.subf %273, %263 : vector<8x2xf32>
    %275 = arith.mulf %272, %274 : vector<8x2xf32>
    %276 = arith.addf %263, %275 : vector<8x2xf32>
    %277 = tpu.concatenate %276, %251 in 1 : vector<8x2xf32>, vector<8x32xf32> -> vector<8x34xf32>
    %278 = arith.index_cast %c4_i32 : i32 to index
    %c0_69 = arith.constant 0 : index
    %c0_70 = arith.constant 0 : index
    %279 = vector.load %arg8[%278, %c0_69, %c0_70] : memref<8x8x34xf32, #tpu.memory_space<vmem>>, vector<1x8x34xf32>
    %280 = vector.shape_cast %279 : vector<1x8x34xf32> to vector<8x34xf32>
    %281 = vector.shape_cast %277 : vector<8x34xf32> to vector<1x8x34xf32>
    tpu.vector_store %arg8[%278, %c0_69, %c0_70], %281 {strides = array<i32>} : memref<8x8x34xf32, #tpu.memory_space<vmem>>, vector<1x8x34xf32>,
    %c5_i32 = arith.constant 5 : i32
    %c8_i32_71 = arith.constant 8 : i32
    %282 = arith.muli %c5_i32, %c8_i32_71 : i32
    %283 = tpu.assume_multiple %282, 8 : i32
    %284 = arith.index_cast %283 : i32 to index
    %c0_72 = arith.constant 0 : index
    %285 = vector.load %arg1[%284, %c0_72] : memref<64x11xf32, #tpu.memory_space<vmem>>, vector<8x11xf32>
    %286 = arith.index_cast %283 : i32 to index
    %c0_73 = arith.constant 0 : index
    %287 = vector.load %arg11[%286, %c0_73] : memref<64x128xf32, #tpu.memory_space<vmem>>, vector<8x128xf32>
    %cst_74 = arith.constant dense<0.000000e+00> : vector<8x128xf32>
    %288 = tpu.matmul %277, %7, %cst_74 {dimension_numbers = #tpu.dot_dimension_numbers<[1], [0], [0], [1], [0, 0, 1, 1], [], []>} : vector<8x34xf32>, vector<34x128xf32>, vector<8x128xf32> -> vector<8x128xf32>
    %289 = arith.addf %287, %288 : vector<8x128xf32>
    %290 = vector.extract_strided_slice %289 {offsets = [0, 0], sizes = [8, 96], strides = [1, 1]} : vector<8x128xf32> to vector<8x96xf32>
    %291 = arith.negf %290 : vector<8x96xf32>
    %292 = math.exp %291 : vector<8x96xf32>
    %cst_75 = arith.constant 1.000000e+00 : f32
    %293 = vector.broadcast %cst_75 : f32 to vector<8x96xf32>
    %294 = arith.addf %293, %292 : vector<8x96xf32>
    %295 = arith.divf %293, %294 : vector<8x96xf32>
    %296 = vector.extract_strided_slice %295 {offsets = [0, 0], sizes = [8, 32], strides = [1, 1]} : vector<8x96xf32> to vector<8x32xf32>
    %297 = vector.extract_strided_slice %295 {offsets = [0, 32], sizes = [8, 32], strides = [1, 1]} : vector<8x96xf32> to vector<8x32xf32>
    %298 = vector.extract_strided_slice %295 {offsets = [0, 64], sizes = [8, 32], strides = [1, 1]} : vector<8x96xf32> to vector<8x32xf32>
    %299 = vector.extract_strided_slice %289 {offsets = [0, 96], sizes = [8, 32], strides = [1, 1]} : vector<8x128xf32> to vector<8x32xf32>
    %300 = math.tanh %299 : vector<8x32xf32>
    %301 = arith.mulf %297, %249 : vector<8x32xf32>
    %302 = arith.mulf %296, %300 : vector<8x32xf32>
    %303 = arith.addf %301, %302 : vector<8x32xf32>
    %304 = math.tanh %303 : vector<8x32xf32>
    %305 = arith.mulf %298, %304 : vector<8x32xf32>
    %306 = vector.extract_strided_slice %277 {offsets = [0, 0], sizes = [8, 2], strides = [1, 1]} : vector<8x34xf32> to vector<8x2xf32>
    %307 = vector.extract_strided_slice %285 {offsets = [0, 0], sizes = [8, 2], strides = [1, 1]} : vector<8x11xf32> to vector<8x2xf32>
    %308 = vector.extract_strided_slice %306 {offsets = [0, 0], sizes = [8, 1], strides = [1, 1]} : vector<8x2xf32> to vector<8x1xf32>
    %309 = vector.extract_strided_slice %306 {offsets = [0, 1], sizes = [8, 1], strides = [1, 1]} : vector<8x2xf32> to vector<8x1xf32>
    %310 = arith.subf %308, %309 : vector<8x1xf32>
    %cst_76 = arith.constant 1.500000e+00 : f32
    %311 = vector.broadcast %cst_76 : f32 to vector<8x1xf32>
    %312 = arith.mulf %311, %310 : vector<8x1xf32>
    %cst_77 = arith.constant 0.666666686 : f32
    %313 = vector.broadcast %cst_77 : f32 to vector<8x1xf32>
    %314 = arith.mulf %313, %308 : vector<8x1xf32>
    %315 = tpu.concatenate %312, %314 in 1 : vector<8x1xf32>, vector<8x1xf32> -> vector<8x2xf32>
    %316 = arith.mulf %307, %315 : vector<8x2xf32>
    %317 = arith.addf %306, %316 : vector<8x2xf32>
    %cst_78 = arith.constant dense<0.000000e+00> : vector<8x128xf32>
    %318 = tpu.matmul %305, %8, %cst_78 {dimension_numbers = #tpu.dot_dimension_numbers<[1], [0], [0], [1], [0, 0, 1, 1], [], []>} : vector<8x32xf32>, vector<32x128xf32>, vector<8x128xf32> -> vector<8x128xf32>
    %319 = vector.broadcast %9 : vector<1x128xf32> to vector<8x128xf32>
    %320 = arith.addf %318, %319 : vector<8x128xf32>
    %321 = vector.extract_strided_slice %320 {offsets = [0, 0], sizes = [8, 2], strides = [1, 1]} : vector<8x128xf32> to vector<8x2xf32>
    %322 = arith.negf %321 : vector<8x2xf32>
    %323 = math.exp %322 : vector<8x2xf32>
    %cst_79 = arith.constant 1.000000e+00 : f32
    %324 = vector.broadcast %cst_79 : f32 to vector<8x2xf32>
    %325 = arith.addf %324, %323 : vector<8x2xf32>
    %326 = arith.divf %324, %325 : vector<8x2xf32>
    %327 = vector.extract_strided_slice %320 {offsets = [0, 2], sizes = [8, 2], strides = [1, 1]} : vector<8x128xf32> to vector<8x2xf32>
    %328 = arith.subf %327, %317 : vector<8x2xf32>
    %329 = arith.mulf %326, %328 : vector<8x2xf32>
    %330 = arith.addf %317, %329 : vector<8x2xf32>
    %331 = tpu.concatenate %330, %305 in 1 : vector<8x2xf32>, vector<8x32xf32> -> vector<8x34xf32>
    %332 = arith.index_cast %c5_i32 : i32 to index
    %c0_80 = arith.constant 0 : index
    %c0_81 = arith.constant 0 : index
    %333 = vector.load %arg8[%332, %c0_80, %c0_81] : memref<8x8x34xf32, #tpu.memory_space<vmem>>, vector<1x8x34xf32>
    %334 = vector.shape_cast %333 : vector<1x8x34xf32> to vector<8x34xf32>
    %335 = vector.shape_cast %331 : vector<8x34xf32> to vector<1x8x34xf32>
    tpu.vector_store %arg8[%332, %c0_80, %c0_81], %335 {strides = array<i32>} : memref<8x8x34xf32, #tpu.memory_space<vmem>>, vector<1x8x34xf32>,
    %c6_i32 = arith.constant 6 : i32
    %c8_i32_82 = arith.constant 8 : i32
    %336 = arith.muli %c6_i32, %c8_i32_82 : i32
    %337 = tpu.assume_multiple %336, 8 : i32
    %338 = arith.index_cast %337 : i32 to index
    %c0_83 = arith.constant 0 : index
    %339 = vector.load %arg1[%338, %c0_83] : memref<64x11xf32, #tpu.memory_space<vmem>>, vector<8x11xf32>
    %340 = arith.index_cast %337 : i32 to index
    %c0_84 = arith.constant 0 : index
    %341 = vector.load %arg11[%340, %c0_84] : memref<64x128xf32, #tpu.memory_space<vmem>>, vector<8x128xf32>
    %cst_85 = arith.constant dense<0.000000e+00> : vector<8x128xf32>
    %342 = tpu.matmul %331, %7, %cst_85 {dimension_numbers = #tpu.dot_dimension_numbers<[1], [0], [0], [1], [0, 0, 1, 1], [], []>} : vector<8x34xf32>, vector<34x128xf32>, vector<8x128xf32> -> vector<8x128xf32>
    %343 = arith.addf %341, %342 : vector<8x128xf32>
    %344 = vector.extract_strided_slice %343 {offsets = [0, 0], sizes = [8, 96], strides = [1, 1]} : vector<8x128xf32> to vector<8x96xf32>
    %345 = arith.negf %344 : vector<8x96xf32>
    %346 = math.exp %345 : vector<8x96xf32>
    %cst_86 = arith.constant 1.000000e+00 : f32
    %347 = vector.broadcast %cst_86 : f32 to vector<8x96xf32>
    %348 = arith.addf %347, %346 : vector<8x96xf32>
    %349 = arith.divf %347, %348 : vector<8x96xf32>
    %350 = vector.extract_strided_slice %349 {offsets = [0, 0], sizes = [8, 32], strides = [1, 1]} : vector<8x96xf32> to vector<8x32xf32>
    %351 = vector.extract_strided_slice %349 {offsets = [0, 32], sizes = [8, 32], strides = [1, 1]} : vector<8x96xf32> to vector<8x32xf32>
    %352 = vector.extract_strided_slice %349 {offsets = [0, 64], sizes = [8, 32], strides = [1, 1]} : vector<8x96xf32> to vector<8x32xf32>
    %353 = vector.extract_strided_slice %343 {offsets = [0, 96], sizes = [8, 32], strides = [1, 1]} : vector<8x128xf32> to vector<8x32xf32>
    %354 = math.tanh %353 : vector<8x32xf32>
    %355 = arith.mulf %351, %303 : vector<8x32xf32>
    %356 = arith.mulf %350, %354 : vector<8x32xf32>
    %357 = arith.addf %355, %356 : vector<8x32xf32>
    %358 = math.tanh %357 : vector<8x32xf32>
    %359 = arith.mulf %352, %358 : vector<8x32xf32>
    %360 = vector.extract_strided_slice %331 {offsets = [0, 0], sizes = [8, 2], strides = [1, 1]} : vector<8x34xf32> to vector<8x2xf32>
    %361 = vector.extract_strided_slice %339 {offsets = [0, 0], sizes = [8, 2], strides = [1, 1]} : vector<8x11xf32> to vector<8x2xf32>
    %362 = vector.extract_strided_slice %360 {offsets = [0, 0], sizes = [8, 1], strides = [1, 1]} : vector<8x2xf32> to vector<8x1xf32>
    %363 = vector.extract_strided_slice %360 {offsets = [0, 1], sizes = [8, 1], strides = [1, 1]} : vector<8x2xf32> to vector<8x1xf32>
    %364 = arith.subf %362, %363 : vector<8x1xf32>
    %cst_87 = arith.constant 1.500000e+00 : f32
    %365 = vector.broadcast %cst_87 : f32 to vector<8x1xf32>
    %366 = arith.mulf %365, %364 : vector<8x1xf32>
    %cst_88 = arith.constant 0.666666686 : f32
    %367 = vector.broadcast %cst_88 : f32 to vector<8x1xf32>
    %368 = arith.mulf %367, %362 : vector<8x1xf32>
    %369 = tpu.concatenate %366, %368 in 1 : vector<8x1xf32>, vector<8x1xf32> -> vector<8x2xf32>
    %370 = arith.mulf %361, %369 : vector<8x2xf32>
    %371 = arith.addf %360, %370 : vector<8x2xf32>
    %cst_89 = arith.constant dense<0.000000e+00> : vector<8x128xf32>
    %372 = tpu.matmul %359, %8, %cst_89 {dimension_numbers = #tpu.dot_dimension_numbers<[1], [0], [0], [1], [0, 0, 1, 1], [], []>} : vector<8x32xf32>, vector<32x128xf32>, vector<8x128xf32> -> vector<8x128xf32>
    %373 = vector.broadcast %9 : vector<1x128xf32> to vector<8x128xf32>
    %374 = arith.addf %372, %373 : vector<8x128xf32>
    %375 = vector.extract_strided_slice %374 {offsets = [0, 0], sizes = [8, 2], strides = [1, 1]} : vector<8x128xf32> to vector<8x2xf32>
    %376 = arith.negf %375 : vector<8x2xf32>
    %377 = math.exp %376 : vector<8x2xf32>
    %cst_90 = arith.constant 1.000000e+00 : f32
    %378 = vector.broadcast %cst_90 : f32 to vector<8x2xf32>
    %379 = arith.addf %378, %377 : vector<8x2xf32>
    %380 = arith.divf %378, %379 : vector<8x2xf32>
    %381 = vector.extract_strided_slice %374 {offsets = [0, 2], sizes = [8, 2], strides = [1, 1]} : vector<8x128xf32> to vector<8x2xf32>
    %382 = arith.subf %381, %371 : vector<8x2xf32>
    %383 = arith.mulf %380, %382 : vector<8x2xf32>
    %384 = arith.addf %371, %383 : vector<8x2xf32>
    %385 = tpu.concatenate %384, %359 in 1 : vector<8x2xf32>, vector<8x32xf32> -> vector<8x34xf32>
    %386 = arith.index_cast %c6_i32 : i32 to index
    %c0_91 = arith.constant 0 : index
    %c0_92 = arith.constant 0 : index
    %387 = vector.load %arg8[%386, %c0_91, %c0_92] : memref<8x8x34xf32, #tpu.memory_space<vmem>>, vector<1x8x34xf32>
    %388 = vector.shape_cast %387 : vector<1x8x34xf32> to vector<8x34xf32>
    %389 = vector.shape_cast %385 : vector<8x34xf32> to vector<1x8x34xf32>
    tpu.vector_store %arg8[%386, %c0_91, %c0_92], %389 {strides = array<i32>} : memref<8x8x34xf32, #tpu.memory_space<vmem>>, vector<1x8x34xf32>,
    %c7_i32 = arith.constant 7 : i32
    %c8_i32_93 = arith.constant 8 : i32
    %390 = arith.muli %c7_i32, %c8_i32_93 : i32
    %391 = tpu.assume_multiple %390, 8 : i32
    %392 = arith.index_cast %391 : i32 to index
    %c0_94 = arith.constant 0 : index
    %393 = vector.load %arg1[%392, %c0_94] : memref<64x11xf32, #tpu.memory_space<vmem>>, vector<8x11xf32>
    %394 = arith.index_cast %391 : i32 to index
    %c0_95 = arith.constant 0 : index
    %395 = vector.load %arg11[%394, %c0_95] : memref<64x128xf32, #tpu.memory_space<vmem>>, vector<8x128xf32>
    %cst_96 = arith.constant dense<0.000000e+00> : vector<8x128xf32>
    %396 = tpu.matmul %385, %7, %cst_96 {dimension_numbers = #tpu.dot_dimension_numbers<[1], [0], [0], [1], [0, 0, 1, 1], [], []>} : vector<8x34xf32>, vector<34x128xf32>, vector<8x128xf32> -> vector<8x128xf32>
    %397 = arith.addf %395, %396 : vector<8x128xf32>
    %398 = vector.extract_strided_slice %397 {offsets = [0, 0], sizes = [8, 96], strides = [1, 1]} : vector<8x128xf32> to vector<8x96xf32>
    %399 = arith.negf %398 : vector<8x96xf32>
    %400 = math.exp %399 : vector<8x96xf32>
    %cst_97 = arith.constant 1.000000e+00 : f32
    %401 = vector.broadcast %cst_97 : f32 to vector<8x96xf32>
    %402 = arith.addf %401, %400 : vector<8x96xf32>
    %403 = arith.divf %401, %402 : vector<8x96xf32>
    %404 = vector.extract_strided_slice %403 {offsets = [0, 0], sizes = [8, 32], strides = [1, 1]} : vector<8x96xf32> to vector<8x32xf32>
    %405 = vector.extract_strided_slice %403 {offsets = [0, 32], sizes = [8, 32], strides = [1, 1]} : vector<8x96xf32> to vector<8x32xf32>
    %406 = vector.extract_strided_slice %403 {offsets = [0, 64], sizes = [8, 32], strides = [1, 1]} : vector<8x96xf32> to vector<8x32xf32>
    %407 = vector.extract_strided_slice %397 {offsets = [0, 96], sizes = [8, 32], strides = [1, 1]} : vector<8x128xf32> to vector<8x32xf32>
    %408 = math.tanh %407 : vector<8x32xf32>
    %409 = arith.mulf %405, %357 : vector<8x32xf32>
    %410 = arith.mulf %404, %408 : vector<8x32xf32>
    %411 = arith.addf %409, %410 : vector<8x32xf32>
    %412 = math.tanh %411 : vector<8x32xf32>
    %413 = arith.mulf %406, %412 : vector<8x32xf32>
    %414 = vector.extract_strided_slice %385 {offsets = [0, 0], sizes = [8, 2], strides = [1, 1]} : vector<8x34xf32> to vector<8x2xf32>
    %415 = vector.extract_strided_slice %393 {offsets = [0, 0], sizes = [8, 2], strides = [1, 1]} : vector<8x11xf32> to vector<8x2xf32>
    %416 = vector.extract_strided_slice %414 {offsets = [0, 0], sizes = [8, 1], strides = [1, 1]} : vector<8x2xf32> to vector<8x1xf32>
    %417 = vector.extract_strided_slice %414 {offsets = [0, 1], sizes = [8, 1], strides = [1, 1]} : vector<8x2xf32> to vector<8x1xf32>
    %418 = arith.subf %416, %417 : vector<8x1xf32>
    %cst_98 = arith.constant 1.500000e+00 : f32
    %419 = vector.broadcast %cst_98 : f32 to vector<8x1xf32>
    %420 = arith.mulf %419, %418 : vector<8x1xf32>
    %cst_99 = arith.constant 0.666666686 : f32
    %421 = vector.broadcast %cst_99 : f32 to vector<8x1xf32>
    %422 = arith.mulf %421, %416 : vector<8x1xf32>
    %423 = tpu.concatenate %420, %422 in 1 : vector<8x1xf32>, vector<8x1xf32> -> vector<8x2xf32>
    %424 = arith.mulf %415, %423 : vector<8x2xf32>
    %425 = arith.addf %414, %424 : vector<8x2xf32>
    %cst_100 = arith.constant dense<0.000000e+00> : vector<8x128xf32>
    %426 = tpu.matmul %413, %8, %cst_100 {dimension_numbers = #tpu.dot_dimension_numbers<[1], [0], [0], [1], [0, 0, 1, 1], [], []>} : vector<8x32xf32>, vector<32x128xf32>, vector<8x128xf32> -> vector<8x128xf32>
    %427 = vector.broadcast %9 : vector<1x128xf32> to vector<8x128xf32>
    %428 = arith.addf %426, %427 : vector<8x128xf32>
    %429 = vector.extract_strided_slice %428 {offsets = [0, 0], sizes = [8, 2], strides = [1, 1]} : vector<8x128xf32> to vector<8x2xf32>
    %430 = arith.negf %429 : vector<8x2xf32>
    %431 = math.exp %430 : vector<8x2xf32>
    %cst_101 = arith.constant 1.000000e+00 : f32
    %432 = vector.broadcast %cst_101 : f32 to vector<8x2xf32>
    %433 = arith.addf %432, %431 : vector<8x2xf32>
    %434 = arith.divf %432, %433 : vector<8x2xf32>
    %435 = vector.extract_strided_slice %428 {offsets = [0, 2], sizes = [8, 2], strides = [1, 1]} : vector<8x128xf32> to vector<8x2xf32>
    %436 = arith.subf %435, %425 : vector<8x2xf32>
    %437 = arith.mulf %434, %436 : vector<8x2xf32>
    %438 = arith.addf %425, %437 : vector<8x2xf32>
    %439 = tpu.concatenate %438, %413 in 1 : vector<8x2xf32>, vector<8x32xf32> -> vector<8x34xf32>
    %440 = arith.index_cast %c7_i32 : i32 to index
    %c0_102 = arith.constant 0 : index
    %c0_103 = arith.constant 0 : index
    %441 = vector.load %arg8[%440, %c0_102, %c0_103] : memref<8x8x34xf32, #tpu.memory_space<vmem>>, vector<1x8x34xf32>
    %442 = vector.shape_cast %441 : vector<1x8x34xf32> to vector<8x34xf32>
    %443 = vector.shape_cast %439 : vector<8x34xf32> to vector<1x8x34xf32>
    tpu.vector_store %arg8[%440, %c0_102, %c0_103], %443 {strides = array<i32>} : memref<8x8x34xf32, #tpu.memory_space<vmem>>, vector<1x8x34xf32>,
    %c8_i32_104 = arith.constant 8 : i32
    %c0_105 = arith.constant 0 : index
    %c0_106 = arith.constant 0 : index
    %444 = vector.load %arg9[%c0_105, %c0_106] : memref<8x34xf32, #tpu.memory_space<vmem>>, vector<8x34xf32>
    tpu.vector_store %arg9[%c0_105, %c0_106], %439 {strides = array<i32>} : memref<8x34xf32, #tpu.memory_space<vmem>>, vector<8x34xf32>,
    %c0_107 = arith.constant 0 : index
    %c0_108 = arith.constant 0 : index
    %445 = vector.load %arg10[%c0_107, %c0_108] : memref<8x32xf32, #tpu.memory_space<vmem>>, vector<8x32xf32>
    tpu.vector_store %arg10[%c0_107, %c0_108], %411 {strides = array<i32>} : memref<8x32xf32, #tpu.memory_space<vmem>>, vector<8x32xf32>,
    return
  }
  func.func @transform_0(%arg0: i32) -> (i32, i32) {
    %c0_i32 = arith.constant 0 : i32
    %c0_i32_0 = arith.constant 0 : i32
    return %arg0, %c0_i32 : i32, i32
  }
  func.func @transform_1(%arg0: i32) -> (i32, i32) {
    %c0_i32 = arith.constant 0 : i32
    %c0_i32_0 = arith.constant 0 : i32
    %c0_i32_1 = arith.constant 0 : i32
    return %c0_i32, %c0_i32_0 : i32, i32
  }
  func.func @transform_2(%arg0: i32) -> (i32, i32) {
    %c0_i32 = arith.constant 0 : i32
    %c0_i32_0 = arith.constant 0 : i32
    %c0_i32_1 = arith.constant 0 : i32
    return %c0_i32, %c0_i32_0 : i32, i32
  }
  func.func @transform_3(%arg0: i32) -> (i32, i32) {
    %c0_i32 = arith.constant 0 : i32
    %c0_i32_0 = arith.constant 0 : i32
    %c0_i32_1 = arith.constant 0 : i32
    return %c0_i32, %c0_i32_0 : i32, i32
  }
  func.func @transform_4(%arg0: i32) -> (i32, i32) {
    %c0_i32 = arith.constant 0 : i32
    %c0_i32_0 = arith.constant 0 : i32
    %c0_i32_1 = arith.constant 0 : i32
    return %c0_i32, %c0_i32_0 : i32, i32
  }
  func.func @transform_5(%arg0: i32) -> (i32, i32) {
    %c0_i32 = arith.constant 0 : i32
    %c0_i32_0 = arith.constant 0 : i32
    %c0_i32_1 = arith.constant 0 : i32
    return %c0_i32, %c0_i32_0 : i32, i32
  }
  func.func @transform_6(%arg0: i32) -> (i32, i32) {
    %c0_i32 = arith.constant 0 : i32
    %c0_i32_0 = arith.constant 0 : i32
    %c0_i32_1 = arith.constant 0 : i32
    return %c0_i32, %c0_i32_0 : i32, i32
  }
  func.func @transform_7(%arg0: i32) -> (i32, i32, i32) {
    %c0_i32 = arith.constant 0 : i32
    %c0_i32_0 = arith.constant 0 : i32
    %c0_i32_1 = arith.constant 0 : i32
    return %arg0, %c0_i32, %c0_i32_0 : i32, i32, i32
  }
  func.func @transform_8(%arg0: i32) -> (i32, i32) {
    %c0_i32 = arith.constant 0 : i32
    %c0_i32_0 = arith.constant 0 : i32
    %c0_i32_1 = arith.constant 0 : i32
    return %c0_i32, %c0_i32_0 : i32, i32
  }
  func.func @transform_9(%arg0: i32) -> (i32, i32) {
    %c0_i32 = arith.constant 0 : i32
    %c0_i32_0 = arith.constant 0 : i32
    %c0_i32_1 = arith.constant 0 : i32
    return %c0_i32, %c0_i32_0 : i32, i32
  }
}

</mosaic_0001>

<llo_original>
// kernel: lstm_forward.1
$region0: #{lstm_forward.1}
  #allocation0 [shape = 'u32[]', space=smem, size = 0x4, offset = 0x4, fixed_abs, tag = 'smem constant byte address 0x4 - core index']
  #allocation1 [shape = 'u32[144,128]{1,0:T(1,128)}', space=vmem, size = 0x12000, scoped, tag = 'internal scratch']
  #allocation2 [shape = 'f32[64,128]{1,0:T(8,128)}', space=vmem, size = 0x8000, scoped, tag = 'scratch operand']
  %s0 = inlined_call_operand.vmem [shape: f32[64,11], index: 0, kind: input, shape index: {}]
  %s1 = inlined_call_operand.vmem [shape: f32[8,34], index: 1, kind: input, shape index: {}]
  %s2 = inlined_call_operand.vmem [shape: f32[8,32], index: 2, kind: input, shape index: {}]
  %s3 = inlined_call_operand.vmem [shape: f32[11,128], index: 3, kind: input, shape index: {}]
  %s4 = inlined_call_operand.vmem [shape: f32[34,128], index: 4, kind: input, shape index: {}]
  %s5 = inlined_call_operand.vmem [shape: f32[32,128], index: 5, kind: input, shape index: {}]
  %s6 = inlined_call_operand.vmem [shape: f32[1,128], index: 6, kind: input, shape index: {}]
  %s7 = inlined_call_operand.vmem [shape: f32[8,8,34], index: 7, kind: output, shape index: {0}]
  %s8 = inlined_call_operand.vmem [shape: f32[8,34], index: 8, kind: output, shape index: {1}]
  %s9 = inlined_call_operand.vmem [shape: f32[8,32], index: 9, kind: output, shape index: {2}]
  %10 = xla_tuple %s7, %s8, %s9
  %s11 = sld [smem:[#allocation0]]
  $region58: #{lstm_forward.1} parent=0
    _
  %s13 = ssub.s32 1, %s11
  %s14 = scalar_select 0, %s13, %s11
  // Predicated region
  $region2: #{lstm_forward.1} parent=0 // pred_check
    _
  $region3: #{lstm_forward.1} parent=0 // pred_check_branch
    %16 = sbr.rel (0) target = $region5
  $region4: #{lstm_forward.1} parent=0 // pred_region
    _
  $region5: #{lstm_forward.1} parent=0 // pred_fallthru
    _
  // Predicated region
  $region6: #{lstm_forward.1} parent=0 // pred_check
    _
  $region7: #{lstm_forward.1} parent=0 // pred_check_branch
    %18 = sbr.rel (0) target = $region9
  $region8: #{lstm_forward.1} parent=0 // pred_region
    _
  $region9: #{lstm_forward.1} parent=0 // pred_fallthru
    _
  // Predicated region
  $region10: #{lstm_forward.1} parent=0 // pred_check
    _
  $region11: #{lstm_forward.1} parent=0 // pred_check_branch
    %20 = sbr.rel (0) target = $region13
  $region12: #{lstm_forward.1} parent=0 // pred_region
    _
  $region13: #{lstm_forward.1} parent=0 // pred_fallthru
    _
  // Predicated region
  $region14: #{lstm_forward.1} parent=0 // pred_check
    _
  $region15: #{lstm_forward.1} parent=0 // pred_check_branch
    %22 = sbr.rel (0) target = $region17
  $region16: #{lstm_forward.1} parent=0 // pred_region
    _
  $region17: #{lstm_forward.1} parent=0 // pred_fallthru
    _
  // Predicated region
  $region18: #{lstm_forward.1} parent=0 // pred_check
    _
  $region19: #{lstm_forward.1} parent=0 // pred_check_branch
    %24 = sbr.rel (0) target = $region21
  $region20: #{lstm_forward.1} parent=0 // pred_region
    _
  $region21: #{lstm_forward.1} parent=0 // pred_fallthru
    _
  // Predicated region
  $region22: #{lstm_forward.1} parent=0 // pred_check
    _
  $region23: #{lstm_forward.1} parent=0 // pred_check_branch
    %26 = sbr.rel (0) target = $region25
  $region24: #{lstm_forward.1} parent=0 // pred_region
    _
  $region25: #{lstm_forward.1} parent=0 // pred_fallthru
    _
  // Predicated region
  $region26: #{lstm_forward.1} parent=0 // pred_check
    _
  $region27: #{lstm_forward.1} parent=0 // pred_check_branch
    %28 = sbr.rel (0) target = $region29
  $region28: #{lstm_forward.1} parent=0 // pred_region
    _
  $region29: #{lstm_forward.1} parent=0 // pred_fallthru
    _
  %p29 = scmp.eq.s32.totalorder 0, 0
  // Predicated region
  $region30: #{lstm_forward.1} parent=0 // pred_check
    %p30 = pneg %p29
  $region31: #{lstm_forward.1} parent=0 // pred_check_branch
    %32 = sbr.rel (%p30) target = $region33
  $region32: #{lstm_forward.1} parent=0 // pred_region
    %v33 = vld [vmem:[%s1] sm:$0xff]
    %vm34 = vcmask 277504
    %35 = vst.msk [vmem:[%s8] sm:$0xff] %vm34, %v33
    %v36 = vld [vmem:[%s2] sm:$0xff]
    %vm37 = vcmask 261120
    %38 = vst.msk [vmem:[%s9] sm:$0xff] %vm37, %v36
  $region33: #{lstm_forward.1} parent=0 // pred_fallthru
    _
  %v39 = vld [vmem:[%s3] sm:$0xff]
  %v40 = vld [vmem:[%s3 + $0x8] sm:$0x7]
  %v41 = vld [vmem:[%s0] sm:$0xff]
  %v42 = vld [vmem:[%s0 + $0x8] sm:$0xff]
  %v43 = vld [vmem:[%s0 + $0x10] sm:$0xff]
  %v44 = vld [vmem:[%s0 + $0x18] sm:$0xff]
  %v45 = vld [vmem:[%s0 + $0x20] sm:$0xff]
  %v46 = vld [vmem:[%s0 + $0x28] sm:$0xff]
  %v47 = vld [vmem:[%s0 + $0x30] sm:$0xff]
  %v48 = vld [vmem:[%s0 + $0x38] sm:$0xff]
  %vm49 = vcmask 89088
  %v51 = vsel %vm49, %v41, 0
  %v54 = vsel %vm49, %v42, 0
  %v57 = vsel %vm49, %v43, 0
  %v60 = vsel %vm49, %v44, 0
  %v63 = vsel %vm49, %v45, 0
  %v66 = vsel %vm49, %v46, 0
  %v69 = vsel %vm49, %v47, 0
  %v72 = vsel %vm49, %v48, 0
  %vm74 = vcmask 1042432
  %v76 = vsel %vm74, %v40, 0
  %78 = vmatprep.subr.mxu0 0.0
  %79 = vmatpush1.msra.mxu0 %v39
  %80 = vmatprep.subr.mxu0 0.0
  %81 = vmatpush1.msra.mxu0 %v76
  %82 = vmatprep.subr.mxu0 0.0
  %83 = vmatpush1.msra.mxu0 0.0
  %84 = vmatprep.subr.mxu0 0.0
  %85 = vmatpush1.msra.mxu0 0.0
  %86 = vmatprep.subr.mxu0 0.0
  %87 = vmatpush1.msra.mxu0 0.0
  %88 = vmatprep.subr.mxu0 0.0
  %89 = vmatpush1.msra.mxu0 0.0
  %90 = vmatprep.subr.mxu0 0.0
  %91 = vmatpush1.msra.mxu0 0.0
  %92 = vmatprep.subr.mxu0 0.0
  %93 = vmatpush1.msra.mxu0 0.0
  %94 = vmatprep.subr.mxu0 0.0
  %95 = vmatpush1.msra.mxu0 0.0
  %96 = vmatprep.subr.mxu0 0.0
  %97 = vmatpush1.msra.mxu0 0.0
  %98 = vmatprep.subr.mxu0 0.0
  %99 = vmatpush1.msra.mxu0 0.0
  %100 = vmatprep.subr.mxu0 0.0
  %101 = vmatpush1.msra.mxu0 0.0
  %102 = vmatprep.subr.mxu0 0.0
  %103 = vmatpush1.msra.mxu0 0.0
  %104 = vmatprep.subr.mxu0 0.0
  %105 = vmatpush1.msra.mxu0 0.0
  %106 = vmatprep.subr.mxu0 0.0
  %107 = vmatpush1.msra.mxu0 0.0
  %108 = vmatprep.subr.mxu0 0.0
  %109 = vmatpush1.msra.mxu0 0.0
  %110 = vmatprep.subr.mxu0 0.0
  %111 = vmatpush1.msra.mxu0 0.0
  %112 = vmatprep.subr.mxu0 0.0
  %113 = vmatpush1.msra.mxu0 0.0
  %114 = vmatprep.subr.mxu0 0.0
  %115 = vmatpush1.msra.mxu0 0.0
  %116 = vmatprep.subr.mxu0 0.0
  %117 = vmatpush1.msra.mxu0 0.0
  %118 = vmatprep.subr.mxu0 0.0
  %119 = vmatpush1.msra.mxu0 0.0
  %120 = vmatprep.subr.mxu0 0.0
  %121 = vmatpush1.msra.mxu0 0.0
  %122 = vmatprep.subr.mxu0 0.0
  %123 = vmatpush1.msra.mxu0 0.0
  %124 = vmatprep.subr.mxu0 0.0
  %125 = vmatpush1.msra.mxu0 0.0
  %126 = vmatprep.subr.mxu0 0.0
  %127 = vmatpush1.msra.mxu0 0.0
  %128 = vmatprep.subr.mxu0 0.0
  %129 = vmatpush1.msra.mxu0 0.0
  %130 = vmatprep.subr.mxu0 0.0
  %131 = vmatpush1.msra.mxu0 0.0
  %132 = vmatprep.subr.mxu0 0.0
  %133 = vmatpush1.msra.mxu0 0.0
  %134 = vmatprep.subr.mxu0 0.0
  %135 = vmatpush1.msra.mxu0 0.0
  %136 = vmatprep.subr.mxu0 0.0
  %137 = vmatpush1.msra.mxu0 0.0
  %138 = vmatprep.subr.mxu0 0.0
  %139 = vmatpush1.msra.mxu0 0.0
  %140 = vmatprep.subr.mxu0 0.0
  %141 = vmatpush1.msra.mxu0 0.0
  %142 = vmatprep.mubr.f32.mxu0 0.0
  %143 = vmatmul.mubr.f32.gmra.mrb[0].mxu0 %v51
  %v144 = vpop.f32.mrb[0].mxu0
  %v145 = vadd.f32 0.0, %v144
  %v146 = vpop.f32.mrb[0].mxu0
  %147 = vmatprep.mubr.f32.mxu0 0.0
  %148 = vmatmul.mubr.f32.gmra.mrb[0].mxu0 %v54
  %v149 = vpop.f32.mrb[0].mxu0
  %v150 = vadd.f32 0.0, %v149
  %v151 = vpop.f32.mrb[0].mxu0
  %152 = vmatprep.mubr.f32.mxu0 0.0
  %153 = vmatmul.mubr.f32.gmra.mrb[0].mxu0 %v57
  %v154 = vpop.f32.mrb[0].mxu0
  %v155 = vadd.f32 0.0, %v154
  %v156 = vpop.f32.mrb[0].mxu0
  %157 = vmatprep.mubr.f32.mxu0 0.0
  %158 = vmatmul.mubr.f32.gmra.mrb[0].mxu0 %v60
  %v159 = vpop.f32.mrb[0].mxu0
  %v160 = vadd.f32 0.0, %v159
  %v161 = vpop.f32.mrb[0].mxu0
  %162 = vmatprep.mubr.f32.mxu0 0.0
  %163 = vmatmul.mubr.f32.gmra.mrb[0].mxu0 %v63
  %v164 = vpop.f32.mrb[0].mxu0
  %v165 = vadd.f32 0.0, %v164
  %v166 = vpop.f32.mrb[0].mxu0
  %167 = vmatprep.mubr.f32.mxu0 0.0
  %168 = vmatmul.mubr.f32.gmra.mrb[0].mxu0 %v66
  %v169 = vpop.f32.mrb[0].mxu0
  %v170 = vadd.f32 0.0, %v169
  %v171 = vpop.f32.mrb[0].mxu0
  %172 = vmatprep.mubr.f32.mxu0 0.0
  %173 = vmatmul.mubr.f32.gmra.mrb[0].mxu0 %v69
  %v174 = vpop.f32.mrb[0].mxu0
  %v175 = vadd.f32 0.0, %v174
  %v176 = vpop.f32.mrb[0].mxu0
  %177 = vmatprep.mubr.f32.mxu0 0.0
  %178 = vmatmul.mubr.f32.gmra.mrb[0].mxu0 %v72
  %v179 = vpop.f32.mrb[0].mxu0
  %v180 = vadd.f32 0.0, %v179
  %v181 = vpop.f32.mrb[0].mxu0
  %182 = vdwg.mxu0
  %183 = vst [vmem:[#allocation2] sm:$0xff] %v145
  %184 = vst [vmem:[#allocation2 + $0x8] sm:$0xff] %v150
  %185 = vst [vmem:[#allocation2 + $0x10] sm:$0xff] %v155
  %186 = vst [vmem:[#allocation2 + $0x18] sm:$0xff] %v160
  %187 = vst [vmem:[#allocation2 + $0x20] sm:$0xff] %v165
  %188 = vst [vmem:[#allocation2 + $0x28] sm:$0xff] %v170
  %189 = vst [vmem:[#allocation2 + $0x30] sm:$0xff] %v175
  %190 = vst [vmem:[#allocation2 + $0x38] sm:$0xff] %v180
  %v191 = vld [vmem:[%s4] sm:$0xff]
  %v192 = vld [vmem:[%s4 + $0x8] sm:$0xff]
  %v193 = vld [vmem:[%s4 + $0x10] sm:$0xff]
  %v194 = vld [vmem:[%s4 + $0x18] sm:$0xff]
  %v195 = vld [vmem:[%s4 + $0x20] sm:$0x3]
  %v196 = vld [vmem:[%s5] sm:$0xff]
  %v197 = vld [vmem:[%s5 + $0x8] sm:$0xff]
  %v198 = vld [vmem:[%s5 + $0x10] sm:$0xff]
  %v199 = vld [vmem:[%s5 + $0x18] sm:$0xff]
  %v200 = vld [vmem:[%s6] sm:$0x1]
  %v201 = vld [vmem:[%s8] sm:$0xff]
  %v202 = vld [vmem:[%s9] sm:$0xff]
  %v203 = vld [vmem:[%s0] sm:$0xff]
  %v204 = vld [vmem:[#allocation2] sm:$0xff]
  %vm205 = vcmask 277504
  %v207 = vsel %vm205, %v201, 0
  %vm209 = vcmask 1041408
  %v211 = vsel %vm209, %v195, 0
  %213 = vmatprep.subr.mxu0 0.0
  %214 = vmatpush1.msra.mxu0 %v191
  %215 = vmatprep.subr.mxu0 0.0
  %216 = vmatpush1.msra.mxu0 %v192
  %217 = vmatprep.subr.mxu0 0.0
  %218 = vmatpush1.msra.mxu0 %v193
  %219 = vmatprep.subr.mxu0 0.0
  %220 = vmatpush1.msra.mxu0 %v194
  %221 = vmatprep.subr.mxu0 0.0
  %222 = vmatpush1.msra.mxu0 %v211
  %223 = vmatprep.subr.mxu0 0.0
  %224 = vmatpush1.msra.mxu0 0.0
  %225 = vmatprep.subr.mxu0 0.0
  %226 = vmatpush1.msra.mxu0 0.0
  %227 = vmatprep.subr.mxu0 0.0
  %228 = vmatpush1.msra.mxu0 0.0
  %229 = vmatprep.subr.mxu0 0.0
  %230 = vmatpush1.msra.mxu0 0.0
  %231 = vmatprep.subr.mxu0 0.0
  %232 = vmatpush1.msra.mxu0 0.0
  %233 = vmatprep.subr.mxu0 0.0
  %234 = vmatpush1.msra.mxu0 0.0
  %235 = vmatprep.subr.mxu0 0.0
  %236 = vmatpush1.msra.mxu0 0.0
  %237 = vmatprep.subr.mxu0 0.0
  %238 = vmatpush1.msra.mxu0 0.0
  %239 = vmatprep.subr.mxu0 0.0
  %240 = vmatpush1.msra.mxu0 0.0
  %241 = vmatprep.subr.mxu0 0.0
  %242 = vmatpush1.msra.mxu0 0.0
  %243 = vmatprep.subr.mxu0 0.0
  %244 = vmatpush1.msra.mxu0 0.0
  %245 = vmatprep.subr.mxu0 0.0
  %246 = vmatpush1.msra.mxu0 0.0
  %247 = vmatprep.subr.mxu0 0.0
  %248 = vmatpush1.msra.mxu0 0.0
  %249 = vmatprep.subr.mxu0 0.0
  %250 = vmatpush1.msra.mxu0 0.0
  %251 = vmatprep.subr.mxu0 0.0
  %252 = vmatpush1.msra.mxu0 0.0
  %253 = vmatprep.subr.mxu0 0.0
  %254 = vmatpush1.msra.mxu0 0.0
  %255 = vmatprep.subr.mxu0 0.0
  %256 = vmatpush1.msra.mxu0 0.0
  %257 = vmatprep.subr.mxu0 0.0
  %258 = vmatpush1.msra.mxu0 0.0
  %259 = vmatprep.subr.mxu0 0.0
  %260 = vmatpush1.msra.mxu0 0.0
  %261 = vmatprep.subr.mxu0 0.0
  %262 = vmatpush1.msra.mxu0 0.0
  %263 = vmatprep.subr.mxu0 0.0
  %264 = vmatpush1.msra.mxu0 0.0
  %265 = vmatprep.subr.mxu0 0.0
  %266 = vmatpush1.msra.mxu0 0.0
  %267 = vmatprep.subr.mxu0 0.0
  %268 = vmatpush1.msra.mxu0 0.0
  %269 = vmatprep.subr.mxu0 0.0
  %270 = vmatpush1.msra.mxu0 0.0
  %271 = vmatprep.subr.mxu0 0.0
  %272 = vmatpush1.msra.mxu0 0.0
  %273 = vmatprep.subr.mxu0 0.0
  %274 = vmatpush1.msra.mxu0 0.0
  %275 = vmatprep.subr.mxu0 0.0
  %276 = vmatpush1.msra.mxu0 0.0
  %277 = vmatprep.mubr.f32.mxu0 0.0
  %278 = vmatmul.mubr.f32.gmra.mrb[0].mxu0 %v207
  %v279 = vpop.f32.mrb[0].mxu0
  %v280 = vadd.f32 0.0, %v279
  %v281 = vpop.f32.mrb[0].mxu0
  %282 = vdwg.mxu0
  %v283 = vadd.f32 %v204, %v280
  %v284 = vxor.u32 %v283, 2147483648
  %v285 = vmul.f32 %v284, 1.442695
  %v286 = vpow.pop %v285
  %v287 = vadd.f32 %v286, 1.0
  %v288 = vrcp.pop %v287
  %v289 = vmul.f32 1.0, %v288
  %v290 = vtanh.pop %v283
  %292 = vrot.lane.b32.xlu0 %v202, 32
  %v293 = vpop.permute.xlu0 %292
  %v295 = vmul.f32 %v289, %v293
  %297 = vrot.lane.b32.xlu0 %v290, 32
  %v298 = vpop.permute.xlu0 %297
  %v300 = vmul.f32 %v289, %v298
  %302 = vrot.lane.b32.xlu0 %v300, 32
  %v303 = vpop.permute.xlu0 %302
  %v305 = vadd.f32 %v295, %v303
  %v306 = vtanh.pop %v305
  %308 = vrot.lane.b32.xlu0 %v306, 32
  %v309 = vpop.permute.xlu0 %308
  %v311 = vmul.f32 %v289, %v309
  %312 = vrot.lane.b32.xlu0 %v201, 127
  %v313 = vpop.permute.xlu0 %312
  %v315 = vsub.f32 %v201, %v313
  %v316 = vmul.f32 %v315, 1.5
  %v317 = vmul.f32 %v201, 0.6666667
  %319 = vrot.lane.b32.xlu0 %v317, 1
  %v320 = vpop.permute.xlu0 %319
  %vm322 = vcmask 7168
  %v323 = vsel %vm322, %v316, %v320
  %v324 = vmul.f32 %v203, %v323
  %v325 = vadd.f32 %v201, %v324
  %v327 = vlaneseq
  %v328 = vshrl.u32 %v327, 7
  %v329 = vsub.s32 0, %v328
  %v330 = vrot.slane %v200, %v329
  %333 = vrot.lane.b32.xlu0 %v311, 64
  %v334 = vpop.permute.xlu0 %333
  %vm335 = vcmask 261120
  %v336 = vsel %vm335, %v334, 0
  %338 = vmatprep.subr.mxu0 0.0
  %339 = vmatpush1.msra.mxu0 %v196
  %340 = vmatprep.subr.mxu0 0.0
  %341 = vmatpush1.msra.mxu0 %v197
  %342 = vmatprep.subr.mxu0 0.0
  %343 = vmatpush1.msra.mxu0 %v198
  %344 = vmatprep.subr.mxu0 0.0
  %345 = vmatpush1.msra.mxu0 %v199
  %346 = vmatprep.subr.mxu0 0.0
  %347 = vmatpush1.msra.mxu0 0.0
  %348 = vmatprep.subr.mxu0 0.0
  %349 = vmatpush1.msra.mxu0 0.0
  %350 = vmatprep.subr.mxu0 0.0
  %351 = vmatpush1.msra.mxu0 0.0
  %352 = vmatprep.subr.mxu0 0.0
  %353 = vmatpush1.msra.mxu0 0.0
  %354 = vmatprep.subr.mxu0 0.0
  %355 = vmatpush1.msra.mxu0 0.0
  %356 = vmatprep.subr.mxu0 0.0
  %357 = vmatpush1.msra.mxu0 0.0
  %358 = vmatprep.subr.mxu0 0.0
  %359 = vmatpush1.msra.mxu0 0.0
  %360 = vmatprep.subr.mxu0 0.0
  %361 = vmatpush1.msra.mxu0 0.0
  %362 = vmatprep.subr.mxu0 0.0
  %363 = vmatpush1.msra.mxu0 0.0
  %364 = vmatprep.subr.mxu0 0.0
  %365 = vmatpush1.msra.mxu0 0.0
  %366 = vmatprep.subr.mxu0 0.0
  %367 = vmatpush1.msra.mxu0 0.0
  %368 = vmatprep.subr.mxu0 0.0
  %369 = vmatpush1.msra.mxu0 0.0
  %370 = vmatprep.subr.mxu0 0.0
  %371 = vmatpush1.msra.mxu0 0.0
  %372 = vmatprep.subr.mxu0 0.0
  %373 = vmatpush1.msra.mxu0 0.0
  %374 = vmatprep.subr.mxu0 0.0
  %375 = vmatpush1.msra.mxu0 0.0
  %376 = vmatprep.subr.mxu0 0.0
  %377 = vmatpush1.msra.mxu0 0.0
  %378 = vmatprep.subr.mxu0 0.0
  %379 = vmatpush1.msra.mxu0 0.0
  %380 = vmatprep.subr.mxu0 0.0
  %381 = vmatpush1.msra.mxu0 0.0
  %382 = vmatprep.subr.mxu0 0.0
  %383 = vmatpush1.msra.mxu0 0.0
  %384 = vmatprep.subr.mxu0 0.0
  %385 = vmatpush1.msra.mxu0 0.0
  %386 = vmatprep.subr.mxu0 0.0
  %387 = vmatpush1.msra.mxu0 0.0
  %388 = vmatprep.subr.mxu0 0.0
  %389 = vmatpush1.msra.mxu0 0.0
  %390 = vmatprep.subr.mxu0 0.0
  %391 = vmatpush1.msra.mxu0 0.0
  %392 = vmatprep.subr.mxu0 0.0
  %393 = vmatpush1.msra.mxu0 0.0
  %394 = vmatprep.subr.mxu0 0.0
  %395 = vmatpush1.msra.mxu0 0.0
  %396 = vmatprep.subr.mxu0 0.0
  %397 = vmatpush1.msra.mxu0 0.0
  %398 = vmatprep.subr.mxu0 0.0
  %399 = vmatpush1.msra.mxu0 0.0
  %400 = vmatprep.subr.mxu0 0.0
  %401 = vmatpush1.msra.mxu0 0.0
  %402 = vmatprep.mubr.f32.mxu0 0.0
  %403 = vmatmul.mubr.f32.gmra.mrb[0].mxu0 %v336
  %v404 = vpop.f32.mrb[0].mxu0
  %v405 = vadd.f32 %v330, %v404
  %v406 = vpop.f32.mrb[0].mxu0
  %407 = vdwg.mxu0
  %v408 = vxor.u32 %v405, 2147483648
  %v409 = vmul.f32 %v408, 1.442695
  %v410 = vpow.pop %v409
  %v411 = vadd.f32 %v410, 1.0
  %v412 = vrcp.pop %v411
  %v413 = vmul.f32 1.0, %v412
  %415 = vrot.lane.b32.xlu0 %v325, 2
  %v416 = vpop.permute.xlu0 %415
  %v418 = vsub.f32 %v405, %v416
  %420 = vrot.lane.b32.xlu0 %v418, 126
  %v421 = vpop.permute.xlu0 %420
  %v423 = vmul.f32 %v413, %v421
  %v424 = vadd.f32 %v325, %v423
  %425 = vrot.lane.b32.xlu0 %v311, 66
  %v426 = vpop.permute.xlu0 %425
  %vm428 = vcmask 15360
  %v429 = vsel %vm428, %v424, %v426
  %430 = vst.msk [vmem:[%s7] sm:$0xff] %vm205, %v429
  %s431 = scalar_lea.vmem %s0, 8
  %v432 = vld [vmem:[%s431] sm:$0xff]
  %s433 = scalar_lea.vmem [#allocation2], 8
  %v434 = vld [vmem:[%s433] sm:$0xff]
  %v436 = vsel %vm205, %v429, 0
  %438 = vmatprep.subr.mxu0 0.0
  %439 = vmatpush1.msra.mxu0 %v191
  %440 = vmatprep.subr.mxu0 0.0
  %441 = vmatpush1.msra.mxu0 %v192
  %442 = vmatprep.subr.mxu0 0.0
  %443 = vmatpush1.msra.mxu0 %v193
  %444 = vmatprep.subr.mxu0 0.0
  %445 = vmatpush1.msra.mxu0 %v194
  %446 = vmatprep.subr.mxu0 0.0
  %447 = vmatpush1.msra.mxu0 %v211
  %448 = vmatprep.subr.mxu0 0.0
  %449 = vmatpush1.msra.mxu0 0.0
  %450 = vmatprep.subr.mxu0 0.0
  %451 = vmatpush1.msra.mxu0 0.0
  %452 = vmatprep.subr.mxu0 0.0
  %453 = vmatpush1.msra.mxu0 0.0
  %454 = vmatprep.subr.mxu0 0.0
  %455 = vmatpush1.msra.mxu0 0.0
  %456 = vmatprep.subr.mxu0 0.0
  %457 = vmatpush1.msra.mxu0 0.0
  %458 = vmatprep.subr.mxu0 0.0
  %459 = vmatpush1.msra.mxu0 0.0
  %460 = vmatprep.subr.mxu0 0.0
  %461 = vmatpush1.msra.mxu0 0.0
  %462 = vmatprep.subr.mxu0 0.0
  %463 = vmatpush1.msra.mxu0 0.0
  %464 = vmatprep.subr.mxu0 0.0
  %465 = vmatpush1.msra.mxu0 0.0
  %466 = vmatprep.subr.mxu0 0.0
  %467 = vmatpush1.msra.mxu0 0.0
  %468 = vmatprep.subr.mxu0 0.0
  %469 = vmatpush1.msra.mxu0 0.0
  %470 = vmatprep.subr.mxu0 0.0
  %471 = vmatpush1.msra.mxu0 0.0
  %472 = vmatprep.subr.mxu0 0.0
  %473 = vmatpush1.msra.mxu0 0.0
  %474 = vmatprep.subr.mxu0 0.0
  %475 = vmatpush1.msra.mxu0 0.0
  %476 = vmatprep.subr.mxu0 0.0
  %477 = vmatpush1.msra.mxu0 0.0
  %478 = vmatprep.subr.mxu0 0.0
  %479 = vmatpush1.msra.mxu0 0.0
  %480 = vmatprep.subr.mxu0 0.0
  %481 = vmatpush1.msra.mxu0 0.0
  %482 = vmatprep.subr.mxu0 0.0
  %483 = vmatpush1.msra.mxu0 0.0
  %484 = vmatprep.subr.mxu0 0.0
  %485 = vmatpush1.msra.mxu0 0.0
  %486 = vmatprep.subr.mxu0 0.0
  %487 = vmatpush1.msra.mxu0 0.0
  %488 = vmatprep.subr.mxu0 0.0
  %489 = vmatpush1.msra.mxu0 0.0
  %490 = vmatprep.subr.mxu0 0.0
  %491 = vmatpush1.msra.mxu0 0.0
  %492 = vmatprep.subr.mxu0 0.0
  %493 = vmatpush1.msra.mxu0 0.0
  %494 = vmatprep.subr.mxu0 0.0
  %495 = vmatpush1.msra.mxu0 0.0
  %496 = vmatprep.subr.mxu0 0.0
  %497 = vmatpush1.msra.mxu0 0.0
  %498 = vmatprep.subr.mxu0 0.0
  %499 = vmatpush1.msra.mxu0 0.0
  %500 = vmatprep.subr.mxu0 0.0
  %501 = vmatpush1.msra.mxu0 0.0
  %502 = vmatprep.mubr.f32.mxu0 0.0
  %503 = vmatmul.mubr.f32.gmra.mrb[0].mxu0 %v436
  %v504 = vpop.f32.mrb[0].mxu0
  %v505 = vadd.f32 0.0, %v504
  %v506 = vpop.f32.mrb[0].mxu0
  %507 = vdwg.mxu0
  %v508 = vadd.f32 %v434, %v505
  %v509 = vxor.u32 %v508, 2147483648
  %v510 = vmul.f32 %v509, 1.442695
  %v511 = vpow.pop %v510
  %v512 = vadd.f32 %v511, 1.0
  %v513 = vrcp.pop %v512
  %v514 = vmul.f32 1.0, %v513
  %v515 = vtanh.pop %v508
  %v516 = vmul.f32 %v514, %v305
  %518 = vrot.lane.b32.xlu0 %v515, 32
  %v519 = vpop.permute.xlu0 %518
  %v521 = vmul.f32 %v514, %v519
  %523 = vrot.lane.b32.xlu0 %v521, 32
  %v524 = vpop.permute.xlu0 %523
  %v526 = vadd.f32 %v516, %v524
  %v527 = vtanh.pop %v526
  %529 = vrot.lane.b32.xlu0 %v527, 32
  %v530 = vpop.permute.xlu0 %529
  %v532 = vmul.f32 %v514, %v530
  %533 = vrot.lane.b32.xlu0 %v429, 127
  %v534 = vpop.permute.xlu0 %533
  %v536 = vsub.f32 %v429, %v534
  %v537 = vmul.f32 %v536, 1.5
  %v538 = vmul.f32 %v429, 0.6666667
  %540 = vrot.lane.b32.xlu0 %v538, 1
  %v541 = vpop.permute.xlu0 %540
  %v543 = vsel %vm322, %v537, %v541
  %v544 = vmul.f32 %v432, %v543
  %v545 = vadd.f32 %v429, %v544
  %547 = vrot.lane.b32.xlu0 %v532, 64
  %v548 = vpop.permute.xlu0 %547
  %v549 = vsel %vm335, %v548, 0
  %551 = vmatprep.subr.mxu0 0.0
  %552 = vmatpush1.msra.mxu0 %v196
  %553 = vmatprep.subr.mxu0 0.0
  %554 = vmatpush1.msra.mxu0 %v197
  %555 = vmatprep.subr.mxu0 0.0
  %556 = vmatpush1.msra.mxu0 %v198
  %557 = vmatprep.subr.mxu0 0.0
  %558 = vmatpush1.msra.mxu0 %v199
  %559 = vmatprep.subr.mxu0 0.0
  %560 = vmatpush1.msra.mxu0 0.0
  %561 = vmatprep.subr.mxu0 0.0
  %562 = vmatpush1.msra.mxu0 0.0
  %563 = vmatprep.subr.mxu0 0.0
  %564 = vmatpush1.msra.mxu0 0.0
  %565 = vmatprep.subr.mxu0 0.0
  %566 = vmatpush1.msra.mxu0 0.0
  %567 = vmatprep.subr.mxu0 0.0
  %568 = vmatpush1.msra.mxu0 0.0
  %569 = vmatprep.subr.mxu0 0.0
  %570 = vmatpush1.msra.mxu0 0.0
  %571 = vmatprep.subr.mxu0 0.0
  %572 = vmatpush1.msra.mxu0 0.0
  %573 = vmatprep.subr.mxu0 0.0
  %574 = vmatpush1.msra.mxu0 0.0
  %575 = vmatprep.subr.mxu0 0.0
  %576 = vmatpush1.msra.mxu0 0.0
  %577 = vmatprep.subr.mxu0 0.0
  %578 = vmatpush1.msra.mxu0 0.0
  %579 = vmatprep.subr.mxu0 0.0
  %580 = vmatpush1.msra.mxu0 0.0
  %581 = vmatprep.subr.mxu0 0.0
  %582 = vmatpush1.msra.mxu0 0.0
  %583 = vmatprep.subr.mxu0 0.0
  %584 = vmatpush1.msra.mxu0 0.0
  %585 = vmatprep.subr.mxu0 0.0
  %586 = vmatpush1.msra.mxu0 0.0
  %587 = vmatprep.subr.mxu0 0.0
  %588 = vmatpush1.msra.mxu0 0.0
  %589 = vmatprep.subr.mxu0 0.0
  %590 = vmatpush1.msra.mxu0 0.0
  %591 = vmatprep.subr.mxu0 0.0
  %592 = vmatpush1.msra.mxu0 0.0
  %593 = vmatprep.subr.mxu0 0.0
  %594 = vmatpush1.msra.mxu0 0.0
  %595 = vmatprep.subr.mxu0 0.0
  %596 = vmatpush1.msra.mxu0 0.0
  %597 = vmatprep.subr.mxu0 0.0
  %598 = vmatpush1.msra.mxu0 0.0
  %599 = vmatprep.subr.mxu0 0.0
  %600 = vmatpush1.msra.mxu0 0.0
  %601 = vmatprep.subr.mxu0 0.0
  %602 = vmatpush1.msra.mxu0 0.0
  %603 = vmatprep.subr.mxu0 0.0
  %604 = vmatpush1.msra.mxu0 0.0
  %605 = vmatprep.subr.mxu0 0.0
  %606 = vmatpush1.msra.mxu0 0.0
  %607 = vmatprep.subr.mxu0 0.0
  %608 = vmatpush1.msra.mxu0 0.0
  %609 = vmatprep.subr.mxu0 0.0
  %610 = vmatpush1.msra.mxu0 0.0
  %611 = vmatprep.subr.mxu0 0.0
  %612 = vmatpush1.msra.mxu0 0.0
  %613 = vmatprep.subr.mxu0 0.0
  %614 = vmatpush1.msra.mxu0 0.0
  %615 = vmatprep.mubr.f32.mxu0 0.0
  %616 = vmatmul.mubr.f32.gmra.mrb[0].mxu0 %v549
  %v617 = vpop.f32.mrb[0].mxu0
  %v618 = vadd.f32 %v330, %v617
  %v619 = vpop.f32.mrb[0].mxu0
  %620 = vdwg.mxu0
  %v621 = vxor.u32 %v618, 2147483648
  %v622 = vmul.f32 %v621, 1.442695
  %v623 = vpow.pop %v622
  %v624 = vadd.f32 %v623, 1.0
  %v625 = vrcp.pop %v624
  %v626 = vmul.f32 1.0, %v625
  %628 = vrot.lane.b32.xlu0 %v545, 2
  %v629 = vpop.permute.xlu0 %628
  %v631 = vsub.f32 %v618, %v629
  %633 = vrot.lane.b32.xlu0 %v631, 126
  %v634 = vpop.permute.xlu0 %633
  %v636 = vmul.f32 %v626, %v634
  %v637 = vadd.f32 %v545, %v636
  %638 = vrot.lane.b32.xlu0 %v532, 66
  %v639 = vpop.permute.xlu0 %638
  %v641 = vsel %vm428, %v637, %v639
  %s642 = scalar_lea.vmem %s7, 8
  %643 = vst.msk [vmem:[%s642] sm:$0xff] %vm205, %v641
  %s644 = scalar_lea.vmem %s0, 16
  %v645 = vld [vmem:[%s644] sm:$0xff]
  %s646 = scalar_lea.vmem [#allocation2], 16
  %v647 = vld [vmem:[%s646] sm:$0xff]
  %v649 = vsel %vm205, %v641, 0
  %651 = vmatprep.subr.mxu0 0.0
  %652 = vmatpush1.msra.mxu0 %v191
  %653 = vmatprep.subr.mxu0 0.0
  %654 = vmatpush1.msra.mxu0 %v192
  %655 = vmatprep.subr.mxu0 0.0
  %656 = vmatpush1.msra.mxu0 %v193
  %657 = vmatprep.subr.mxu0 0.0
  %658 = vmatpush1.msra.mxu0 %v194
  %659 = vmatprep.subr.mxu0 0.0
  %660 = vmatpush1.msra.mxu0 %v211
  %661 = vmatprep.subr.mxu0 0.0
  %662 = vmatpush1.msra.mxu0 0.0
  %663 = vmatprep.subr.mxu0 0.0
  %664 = vmatpush1.msra.mxu0 0.0
  %665 = vmatprep.subr.mxu0 0.0
  %666 = vmatpush1.msra.mxu0 0.0
  %667 = vmatprep.subr.mxu0 0.0
  %668 = vmatpush1.msra.mxu0 0.0
  %669 = vmatprep.subr.mxu0 0.0
  %670 = vmatpush1.msra.mxu0 0.0
  %671 = vmatprep.subr.mxu0 0.0
  %672 = vmatpush1.msra.mxu0 0.0
  %673 = vmatprep.subr.mxu0 0.0
  %674 = vmatpush1.msra.mxu0 0.0
  %675 = vmatprep.subr.mxu0 0.0
  %676 = vmatpush1.msra.mxu0 0.0
  %677 = vmatprep.subr.mxu0 0.0
  %678 = vmatpush1.msra.mxu0 0.0
  %679 = vmatprep.subr.mxu0 0.0
  %680 = vmatpush1.msra.mxu0 0.0
  %681 = vmatprep.subr.mxu0 0.0
  %682 = vmatpush1.msra.mxu0 0.0
  %683 = vmatprep.subr.mxu0 0.0
  %684 = vmatpush1.msra.mxu0 0.0
  %685 = vmatprep.subr.mxu0 0.0
  %686 = vmatpush1.msra.mxu0 0.0
  %687 = vmatprep.subr.mxu0 0.0
  %688 = vmatpush1.msra.mxu0 0.0
  %689 = vmatprep.subr.mxu0 0.0
  %690 = vmatpush1.msra.mxu0 0.0
  %691 = vmatprep.subr.mxu0 0.0
  %692 = vmatpush1.msra.mxu0 0.0
  %693 = vmatprep.subr.mxu0 0.0
  %694 = vmatpush1.msra.mxu0 0.0
  %695 = vmatprep.subr.mxu0 0.0
  %696 = vmatpush1.msra.mxu0 0.0
  %697 = vmatprep.subr.mxu0 0.0
  %698 = vmatpush1.msra.mxu0 0.0
  %699 = vmatprep.subr.mxu0 0.0
  %700 = vmatpush1.msra.mxu0 0.0
  %701 = vmatprep.subr.mxu0 0.0
  %702 = vmatpush1.msra.mxu0 0.0
  %703 = vmatprep.subr.mxu0 0.0
  %704 = vmatpush1.msra.mxu0 0.0
  %705 = vmatprep.subr.mxu0 0.0
  %706 = vmatpush1.msra.mxu0 0.0
  %707 = vmatprep.subr.mxu0 0.0
  %708 = vmatpush1.msra.mxu0 0.0
  %709 = vmatprep.subr.mxu0 0.0
  %710 = vmatpush1.msra.mxu0 0.0
  %711 = vmatprep.subr.mxu0 0.0
  %712 = vmatpush1.msra.mxu0 0.0
  %713 = vmatprep.subr.mxu0 0.0
  %714 = vmatpush1.msra.mxu0 0.0
  %715 = vmatprep.mubr.f32.mxu0 0.0
  %716 = vmatmul.mubr.f32.gmra.mrb[0].mxu0 %v649
  %v717 = vpop.f32.mrb[0].mxu0
  %v718 = vadd.f32 0.0, %v717
  %v719 = vpop.f32.mrb[0].mxu0
  %720 = vdwg.mxu0
  %v721 = vadd.f32 %v647, %v718
  %v722 = vxor.u32 %v721, 2147483648
  %v723 = vmul.f32 %v722, 1.442695
  %v724 = vpow.pop %v723
  %v725 = vadd.f32 %v724, 1.0
  %v726 = vrcp.pop %v725
  %v727 = vmul.f32 1.0, %v726
  %v728 = vtanh.pop %v721
  %v729 = vmul.f32 %v727, %v526
  %731 = vrot.lane.b32.xlu0 %v728, 32
  %v732 = vpop.permute.xlu0 %731
  %v734 = vmul.f32 %v727, %v732
  %736 = vrot.lane.b32.xlu0 %v734, 32
  %v737 = vpop.permute.xlu0 %736
  %v739 = vadd.f32 %v729, %v737
  %v740 = vtanh.pop %v739
  %742 = vrot.lane.b32.xlu0 %v740, 32
  %v743 = vpop.permute.xlu0 %742
  %v745 = vmul.f32 %v727, %v743
  %746 = vrot.lane.b32.xlu0 %v641, 127
  %v747 = vpop.permute.xlu0 %746
  %v749 = vsub.f32 %v641, %v747
  %v750 = vmul.f32 %v749, 1.5
  %v751 = vmul.f32 %v641, 0.6666667
  %753 = vrot.lane.b32.xlu0 %v751, 1
  %v754 = vpop.permute.xlu0 %753
  %v756 = vsel %vm322, %v750, %v754
  %v757 = vmul.f32 %v645, %v756
  %v758 = vadd.f32 %v641, %v757
  %760 = vrot.lane.b32.xlu0 %v745, 64
  %v761 = vpop.permute.xlu0 %760
  %v762 = vsel %vm335, %v761, 0
  %764 = vmatprep.subr.mxu0 0.0
  %765 = vmatpush1.msra.mxu0 %v196
  %766 = vmatprep.subr.mxu0 0.0
  %767 = vmatpush1.msra.mxu0 %v197
  %768 = vmatprep.subr.mxu0 0.0
  %769 = vmatpush1.msra.mxu0 %v198
  %770 = vmatprep.subr.mxu0 0.0
  %771 = vmatpush1.msra.mxu0 %v199
  %772 = vmatprep.subr.mxu0 0.0
  %773 = vmatpush1.msra.mxu0 0.0
  %774 = vmatprep.subr.mxu0 0.0
  %775 = vmatpush1.msra.mxu0 0.0
  %776 = vmatprep.subr.mxu0 0.0
  %777 = vmatpush1.msra.mxu0 0.0
  %778 = vmatprep.subr.mxu0 0.0
  %779 = vmatpush1.msra.mxu0 0.0
  %780 = vmatprep.subr.mxu0 0.0
  %781 = vmatpush1.msra.mxu0 0.0
  %782 = vmatprep.subr.mxu0 0.0
  %783 = vmatpush1.msra.mxu0 0.0
  %784 = vmatprep.subr.mxu0 0.0
  %785 = vmatpush1.msra.mxu0 0.0
  %786 = vmatprep.subr.mxu0 0.0
  %787 = vmatpush1.msra.mxu0 0.0
  %788 = vmatprep.subr.mxu0 0.0
  %789 = vmatpush1.msra.mxu0 0.0
  %790 = vmatprep.subr.mxu0 0.0
  %791 = vmatpush1.msra.mxu0 0.0
  %792 = vmatprep.subr.mxu0 0.0
  %793 = vmatpush1.msra.mxu0 0.0
  %794 = vmatprep.subr.mxu0 0.0
  %795 = vmatpush1.msra.mxu0 0.0
  %796 = vmatprep.subr.mxu0 0.0
  %797 = vmatpush1.msra.mxu0 0.0
  %798 = vmatprep.subr.mxu0 0.0
  %799 = vmatpush1.msra.mxu0 0.0
  %800 = vmatprep.subr.mxu0 0.0
  %801 = vmatpush1.msra.mxu0 0.0
  %802 = vmatprep.subr.mxu0 0.0
  %803 = vmatpush1.msra.mxu0 0.0
  %804 = vmatprep.subr.mxu0 0.0
  %805 = vmatpush1.msra.mxu0 0.0
  %806 = vmatprep.subr.mxu0 0.0
  %807 = vmatpush1.msra.mxu0 0.0
  %808 = vmatprep.subr.mxu0 0.0
  %809 = vmatpush1.msra.mxu0 0.0
  %810 = vmatprep.subr.mxu0 0.0
  %811 = vmatpush1.msra.mxu0 0.0
  %812 = vmatprep.subr.mxu0 0.0
  %813 = vmatpush1.msra.mxu0 0.0
  %814 = vmatprep.subr.mxu0 0.0
  %815 = vmatpush1.msra.mxu0 0.0
  %816 = vmatprep.subr.mxu0 0.0
  %817 = vmatpush1.msra.mxu0 0.0
  %818 = vmatprep.subr.mxu0 0.0
  %819 = vmatpush1.msra.mxu0 0.0
  %820 = vmatprep.subr.mxu0 0.0
  %821 = vmatpush1.msra.mxu0 0.0
  %822 = vmatprep.subr.mxu0 0.0
  %823 = vmatpush1.msra.mxu0 0.0
  %824 = vmatprep.subr.mxu0 0.0
  %825 = vmatpush1.msra.mxu0 0.0
  %826 = vmatprep.subr.mxu0 0.0
  %827 = vmatpush1.msra.mxu0 0.0
  %828 = vmatprep.mubr.f32.mxu0 0.0
  %829 = vmatmul.mubr.f32.gmra.mrb[0].mxu0 %v762
  %v830 = vpop.f32.mrb[0].mxu0
  %v831 = vadd.f32 %v330, %v830
  %v832 = vpop.f32.mrb[0].mxu0
  %833 = vdwg.mxu0
  %v834 = vxor.u32 %v831, 2147483648
  %v835 = vmul.f32 %v834, 1.442695
  %v836 = vpow.pop %v835
  %v837 = vadd.f32 %v836, 1.0
  %v838 = vrcp.pop %v837
  %v839 = vmul.f32 1.0, %v838
  %841 = vrot.lane.b32.xlu0 %v758, 2
  %v842 = vpop.permute.xlu0 %841
  %v844 = vsub.f32 %v831, %v842
  %846 = vrot.lane.b32.xlu0 %v844, 126
  %v847 = vpop.permute.xlu0 %846
  %v849 = vmul.f32 %v839, %v847
  %v850 = vadd.f32 %v758, %v849
  %851 = vrot.lane.b32.xlu0 %v745, 66
  %v852 = vpop.permute.xlu0 %851
  %v854 = vsel %vm428, %v850, %v852
  %s855 = scalar_lea.vmem %s7, 16
  %856 = vst.msk [vmem:[%s855] sm:$0xff] %vm205, %v854
  %s857 = scalar_lea.vmem %s0, 24
  %v858 = vld [vmem:[%s857] sm:$0xff]
  %s859 = scalar_lea.vmem [#allocation2], 24
  %v860 = vld [vmem:[%s859] sm:$0xff]
  %v862 = vsel %vm205, %v854, 0
  %864 = vmatprep.subr.mxu0 0.0
  %865 = vmatpush1.msra.mxu0 %v191
  %866 = vmatprep.subr.mxu0 0.0
  %867 = vmatpush1.msra.mxu0 %v192
  %868 = vmatprep.subr.mxu0 0.0
  %869 = vmatpush1.msra.mxu0 %v193
  %870 = vmatprep.subr.mxu0 0.0
  %871 = vmatpush1.msra.mxu0 %v194
  %872 = vmatprep.subr.mxu0 0.0
  %873 = vmatpush1.msra.mxu0 %v211
  %874 = vmatprep.subr.mxu0 0.0
  %875 = vmatpush1.msra.mxu0 0.0
  %876 = vmatprep.subr.mxu0 0.0
  %877 = vmatpush1.msra.mxu0 0.0
  %878 = vmatprep.subr.mxu0 0.0
  %879 = vmatpush1.msra.mxu0 0.0
  %880 = vmatprep.subr.mxu0 0.0
  %881 = vmatpush1.msra.mxu0 0.0
  %882 = vmatprep.subr.mxu0 0.0
  %883 = vmatpush1.msra.mxu0 0.0
  %884 = vmatprep.subr.mxu0 0.0
  %885 = vmatpush1.msra.mxu0 0.0
  %886 = vmatprep.subr.mxu0 0.0
  %887 = vmatpush1.msra.mxu0 0.0
  %888 = vmatprep.subr.mxu0 0.0
  %889 = vmatpush1.msra.mxu0 0.0
  %890 = vmatprep.subr.mxu0 0.0
  %891 = vmatpush1.msra.mxu0 0.0
  %892 = vmatprep.subr.mxu0 0.0
  %893 = vmatpush1.msra.mxu0 0.0
  %894 = vmatprep.subr.mxu0 0.0
  %895 = vmatpush1.msra.mxu0 0.0
  %896 = vmatprep.subr.mxu0 0.0
  %897 = vmatpush1.msra.mxu0 0.0
  %898 = vmatprep.subr.mxu0 0.0
  %899 = vmatpush1.msra.mxu0 0.0
  %900 = vmatprep.subr.mxu0 0.0
  %901 = vmatpush1.msra.mxu0 0.0
  %902 = vmatprep.subr.mxu0 0.0
  %903 = vmatpush1.msra.mxu0 0.0
  %904 = vmatprep.subr.mxu0 0.0
  %905 = vmatpush1.msra.mxu0 0.0
  %906 = vmatprep.subr.mxu0 0.0
  %907 = vmatpush1.msra.mxu0 0.0
  %908 = vmatprep.subr.mxu0 0.0
  %909 = vmatpush1.msra.mxu0 0.0
  %910 = vmatprep.subr.mxu0 0.0
  %911 = vmatpush1.msra.mxu0 0.0
  %912 = vmatprep.subr.mxu0 0.0
  %913 = vmatpush1.msra.mxu0 0.0
  %914 = vmatprep.subr.mxu0 0.0
  %915 = vmatpush1.msra.mxu0 0.0
  %916 = vmatprep.subr.mxu0 0.0
  %917 = vmatpush1.msra.mxu0 0.0
  %918 = vmatprep.subr.mxu0 0.0
  %919 = vmatpush1.msra.mxu0 0.0
  %920 = vmatprep.subr.mxu0 0.0
  %921 = vmatpush1.msra.mxu0 0.0
  %922 = vmatprep.subr.mxu0 0.0
  %923 = vmatpush1.msra.mxu0 0.0
  %924 = vmatprep.subr.mxu0 0.0
  %925 = vmatpush1.msra.mxu0 0.0
  %926 = vmatprep.subr.mxu0 0.0
  %927 = vmatpush1.msra.mxu0 0.0
  %928 = vmatprep.mubr.f32.mxu0 0.0
  %929 = vmatmul.mubr.f32.gmra.mrb[0].mxu0 %v862
  %v930 = vpop.f32.mrb[0].mxu0
  %v931 = vadd.f32 0.0, %v930
  %v932 = vpop.f32.mrb[0].mxu0
  %933 = vdwg.mxu0
  %v934 = vadd.f32 %v860, %v931
  %v935 = vxor.u32 %v934, 2147483648
  %v936 = vmul.f32 %v935, 1.442695
  %v937 = vpow.pop %v936
  %v938 = vadd.f32 %v937, 1.0
  %v939 = vrcp.pop %v938
  %v940 = vmul.f32 1.0, %v939
  %v941 = vtanh.pop %v934
  %v942 = vmul.f32 %v940, %v739
  %944 = vrot.lane.b32.xlu0 %v941, 32
  %v945 = vpop.permute.xlu0 %944
  %v947 = vmul.f32 %v940, %v945
  %949 = vrot.lane.b32.xlu0 %v947, 32
  %v950 = vpop.permute.xlu0 %949
  %v952 = vadd.f32 %v942, %v950
  %v953 = vtanh.pop %v952
  %955 = vrot.lane.b32.xlu0 %v953, 32
  %v956 = vpop.permute.xlu0 %955
  %v958 = vmul.f32 %v940, %v956
  %959 = vrot.lane.b32.xlu0 %v854, 127
  %v960 = vpop.permute.xlu0 %959
  %v962 = vsub.f32 %v854, %v960
  %v963 = vmul.f32 %v962, 1.5
  %v964 = vmul.f32 %v854, 0.6666667
  %966 = vrot.lane.b32.xlu0 %v964, 1
  %v967 = vpop.permute.xlu0 %966
  %v969 = vsel %vm322, %v963, %v967
  %v970 = vmul.f32 %v858, %v969
  %v971 = vadd.f32 %v854, %v970
  %973 = vrot.lane.b32.xlu0 %v958, 64
  %v974 = vpop.permute.xlu0 %973
  %v975 = vsel %vm335, %v974, 0
  %977 = vmatprep.subr.mxu0 0.0
  %978 = vmatpush1.msra.mxu0 %v196
  %979 = vmatprep.subr.mxu0 0.0
  %980 = vmatpush1.msra.mxu0 %v197
  %981 = vmatprep.subr.mxu0 0.0
  %982 = vmatpush1.msra.mxu0 %v198
  %983 = vmatprep.subr.mxu0 0.0
  %984 = vmatpush1.msra.mxu0 %v199
  %985 = vmatprep.subr.mxu0 0.0
  %986 = vmatpush1.msra.mxu0 0.0
  %987 = vmatprep.subr.mxu0 0.0
  %988 = vmatpush1.msra.mxu0 0.0
  %989 = vmatprep.subr.mxu0 0.0
  %990 = vmatpush1.msra.mxu0 0.0
  %991 = vmatprep.subr.mxu0 0.0
  %992 = vmatpush1.msra.mxu0 0.0
  %993 = vmatprep.subr.mxu0 0.0
  %994 = vmatpush1.msra.mxu0 0.0
  %995 = vmatprep.subr.mxu0 0.0
  %996 = vmatpush1.msra.mxu0 0.0
  %997 = vmatprep.subr.mxu0 0.0
  %998 = vmatpush1.msra.mxu0 0.0
  %999 = vmatprep.subr.mxu0 0.0
  %1000 = vmatpush1.msra.mxu0 0.0
  %1001 = vmatprep.subr.mxu0 0.0
  %1002 = vmatpush1.msra.mxu0 0.0
  %1003 = vmatprep.subr.mxu0 0.0
  %1004 = vmatpush1.msra.mxu0 0.0
  %1005 = vmatprep.subr.mxu0 0.0
  %1006 = vmatpush1.msra.mxu0 0.0
  %1007 = vmatprep.subr.mxu0 0.0
  %1008 = vmatpush1.msra.mxu0 0.0
  %1009 = vmatprep.subr.mxu0 0.0
  %1010 = vmatpush1.msra.mxu0 0.0
  %1011 = vmatprep.subr.mxu0 0.0
  %1012 = vmatpush1.msra.mxu0 0.0
  %1013 = vmatprep.subr.mxu0 0.0
  %1014 = vmatpush1.msra.mxu0 0.0
  %1015 = vmatprep.subr.mxu0 0.0
  %1016 = vmatpush1.msra.mxu0 0.0
  %1017 = vmatprep.subr.mxu0 0.0
  %1018 = vmatpush1.msra.mxu0 0.0
  %1019 = vmatprep.subr.mxu0 0.0
  %1020 = vmatpush1.msra.mxu0 0.0
  %1021 = vmatprep.subr.mxu0 0.0
  %1022 = vmatpush1.msra.mxu0 0.0
  %1023 = vmatprep.subr.mxu0 0.0
  %1024 = vmatpush1.msra.mxu0 0.0
  %1025 = vmatprep.subr.mxu0 0.0
  %1026 = vmatpush1.msra.mxu0 0.0
  %1027 = vmatprep.subr.mxu0 0.0
  %1028 = vmatpush1.msra.mxu0 0.0
  %1029 = vmatprep.subr.mxu0 0.0
  %1030 = vmatpush1.msra.mxu0 0.0
  %1031 = vmatprep.subr.mxu0 0.0
  %1032 = vmatpush1.msra.mxu0 0.0
  %1033 = vmatprep.subr.mxu0 0.0
  %1034 = vmatpush1.msra.mxu0 0.0
  %1035 = vmatprep.subr.mxu0 0.0
  %1036 = vmatpush1.msra.mxu0 0.0
  %1037 = vmatprep.subr.mxu0 0.0
  %1038 = vmatpush1.msra.mxu0 0.0
  %1039 = vmatprep.subr.mxu0 0.0
  %1040 = vmatpush1.msra.mxu0 0.0
  %1041 = vmatprep.mubr.f32.mxu0 0.0
  %1042 = vmatmul.mubr.f32.gmra.mrb[0].mxu0 %v975
  %v1043 = vpop.f32.mrb[0].mxu0
  %v1044 = vadd.f32 %v330, %v1043
  %v1045 = vpop.f32.mrb[0].mxu0
  %1046 = vdwg.mxu0
  %v1047 = vxor.u32 %v1044, 2147483648
  %v1048 = vmul.f32 %v1047, 1.442695
  %v1049 = vpow.pop %v1048
  %v1050 = vadd.f32 %v1049, 1.0
  %v1051 = vrcp.pop %v1050
  %v1052 = vmul.f32 1.0, %v1051
  %1054 = vrot.lane.b32.xlu0 %v971, 2
  %v1055 = vpop.permute.xlu0 %1054
  %v1057 = vsub.f32 %v1044, %v1055
  %1059 = vrot.lane.b32.xlu0 %v1057, 126
  %v1060 = vpop.permute.xlu0 %1059
  %v1062 = vmul.f32 %v1052, %v1060
  %v1063 = vadd.f32 %v971, %v1062
  %1064 = vrot.lane.b32.xlu0 %v958, 66
  %v1065 = vpop.permute.xlu0 %1064
  %v1067 = vsel %vm428, %v1063, %v1065
  %s1068 = scalar_lea.vmem %s7, 24
  %1069 = vst.msk [vmem:[%s1068] sm:$0xff] %vm205, %v1067
  %s1070 = scalar_lea.vmem %s0, 32
  %v1071 = vld [vmem:[%s1070] sm:$0xff]
  %s1072 = scalar_lea.vmem [#allocation2], 32
  %v1073 = vld [vmem:[%s1072] sm:$0xff]
  %v1075 = vsel %vm205, %v1067, 0
  %1077 = vmatprep.subr.mxu0 0.0
  %1078 = vmatpush1.msra.mxu0 %v191
  %1079 = vmatprep.subr.mxu0 0.0
  %1080 = vmatpush1.msra.mxu0 %v192
  %1081 = vmatprep.subr.mxu0 0.0
  %1082 = vmatpush1.msra.mxu0 %v193
  %1083 = vmatprep.subr.mxu0 0.0
  %1084 = vmatpush1.msra.mxu0 %v194
  %1085 = vmatprep.subr.mxu0 0.0
  %1086 = vmatpush1.msra.mxu0 %v211
  %1087 = vmatprep.subr.mxu0 0.0
  %1088 = vmatpush1.msra.mxu0 0.0
  %1089 = vmatprep.subr.mxu0 0.0
  %1090 = vmatpush1.msra.mxu0 0.0
  %1091 = vmatprep.subr.mxu0 0.0
  %1092 = vmatpush1.msra.mxu0 0.0
  %1093 = vmatprep.subr.mxu0 0.0
  %1094 = vmatpush1.msra.mxu0 0.0
  %1095 = vmatprep.subr.mxu0 0.0
  %1096 = vmatpush1.msra.mxu0 0.0
  %1097 = vmatprep.subr.mxu0 0.0
  %1098 = vmatpush1.msra.mxu0 0.0
  %1099 = vmatprep.subr.mxu0 0.0
  %1100 = vmatpush1.msra.mxu0 0.0
  %1101 = vmatprep.subr.mxu0 0.0
  %1102 = vmatpush1.msra.mxu0 0.0
  %1103 = vmatprep.subr.mxu0 0.0
  %1104 = vmatpush1.msra.mxu0 0.0
  %1105 = vmatprep.subr.mxu0 0.0
  %1106 = vmatpush1.msra.mxu0 0.0
  %1107 = vmatprep.subr.mxu0 0.0
  %1108 = vmatpush1.msra.mxu0 0.0
  %1109 = vmatprep.subr.mxu0 0.0
  %1110 = vmatpush1.msra.mxu0 0.0
  %1111 = vmatprep.subr.mxu0 0.0
  %1112 = vmatpush1.msra.mxu0 0.0
  %1113 = vmatprep.subr.mxu0 0.0
  %1114 = vmatpush1.msra.mxu0 0.0
  %1115 = vmatprep.subr.mxu0 0.0
  %1116 = vmatpush1.msra.mxu0 0.0
  %1117 = vmatprep.subr.mxu0 0.0
  %1118 = vmatpush1.msra.mxu0 0.0
  %1119 = vmatprep.subr.mxu0 0.0
  %1120 = vmatpush1.msra.mxu0 0.0
  %1121 = vmatprep.subr.mxu0 0.0
  %1122 = vmatpush1.msra.mxu0 0.0
  %1123 = vmatprep.subr.mxu0 0.0
  %1124 = vmatpush1.msra.mxu0 0.0
  %1125 = vmatprep.subr.mxu0 0.0
  %1126 = vmatpush1.msra.mxu0 0.0
  %1127 = vmatprep.subr.mxu0 0.0
  %1128 = vmatpush1.msra.mxu0 0.0
  %1129 = vmatprep.subr.mxu0 0.0
  %1130 = vmatpush1.msra.mxu0 0.0
  %1131 = vmatprep.subr.mxu0 0.0
  %1132 = vmatpush1.msra.mxu0 0.0
  %1133 = vmatprep.subr.mxu0 0.0
  %1134 = vmatpush1.msra.mxu0 0.0
  %1135 = vmatprep.subr.mxu0 0.0
  %1136 = vmatpush1.msra.mxu0 0.0
  %1137 = vmatprep.subr.mxu0 0.0
  %1138 = vmatpush1.msra.mxu0 0.0
  %1139 = vmatprep.subr.mxu0 0.0
  %1140 = vmatpush1.msra.mxu0 0.0
  %1141 = vmatprep.mubr.f32.mxu0 0.0
  %1142 = vmatmul.mubr.f32.gmra.mrb[0].mxu0 %v1075
  %v1143 = vpop.f32.mrb[0].mxu0
  %v1144 = vadd.f32 0.0, %v1143
  %v1145 = vpop.f32.mrb[0].mxu0
  %1146 = vdwg.mxu0
  %v1147 = vadd.f32 %v1073, %v1144
  %v1148 = vxor.u32 %v1147, 2147483648
  %v1149 = vmul.f32 %v1148, 1.442695
  %v1150 = vpow.pop %v1149
  %v1151 = vadd.f32 %v1150, 1.0
  %v1152 = vrcp.pop %v1151
  %v1153 = vmul.f32 1.0, %v1152
  %v1154 = vtanh.pop %v1147
  %v1155 = vmul.f32 %v1153, %v952
  %1157 = vrot.lane.b32.xlu0 %v1154, 32
  %v1158 = vpop.permute.xlu0 %1157
  %v1160 = vmul.f32 %v1153, %v1158
  %1162 = vrot.lane.b32.xlu0 %v1160, 32
  %v1163 = vpop.permute.xlu0 %1162
  %v1165 = vadd.f32 %v1155, %v1163
  %v1166 = vtanh.pop %v1165
  %1168 = vrot.lane.b32.xlu0 %v1166, 32
  %v1169 = vpop.permute.xlu0 %1168
  %v1171 = vmul.f32 %v1153, %v1169
  %1172 = vrot.lane.b32.xlu0 %v1067, 127
  %v1173 = vpop.permute.xlu0 %1172
  %v1175 = vsub.f32 %v1067, %v1173
  %v1176 = vmul.f32 %v1175, 1.5
  %v1177 = vmul.f32 %v1067, 0.6666667
  %1179 = vrot.lane.b32.xlu0 %v1177, 1
  %v1180 = vpop.permute.xlu0 %1179
  %v1182 = vsel %vm322, %v1176, %v1180
  %v1183 = vmul.f32 %v1071, %v1182
  %v1184 = vadd.f32 %v1067, %v1183
  %1186 = vrot.lane.b32.xlu0 %v1171, 64
  %v1187 = vpop.permute.xlu0 %1186
  %v1188 = vsel %vm335, %v1187, 0
  %1190 = vmatprep.subr.mxu0 0.0
  %1191 = vmatpush1.msra.mxu0 %v196
  %1192 = vmatprep.subr.mxu0 0.0
  %1193 = vmatpush1.msra.mxu0 %v197
  %1194 = vmatprep.subr.mxu0 0.0
  %1195 = vmatpush1.msra.mxu0 %v198
  %1196 = vmatprep.subr.mxu0 0.0
  %1197 = vmatpush1.msra.mxu0 %v199
  %1198 = vmatprep.subr.mxu0 0.0
  %1199 = vmatpush1.msra.mxu0 0.0
  %1200 = vmatprep.subr.mxu0 0.0
  %1201 = vmatpush1.msra.mxu0 0.0
  %1202 = vmatprep.subr.mxu0 0.0
  %1203 = vmatpush1.msra.mxu0 0.0
  %1204 = vmatprep.subr.mxu0 0.0
  %1205 = vmatpush1.msra.mxu0 0.0
  %1206 = vmatprep.subr.mxu0 0.0
  %1207 = vmatpush1.msra.mxu0 0.0
  %1208 = vmatprep.subr.mxu0 0.0
  %1209 = vmatpush1.msra.mxu0 0.0
  %1210 = vmatprep.subr.mxu0 0.0
  %1211 = vmatpush1.msra.mxu0 0.0
  %1212 = vmatprep.subr.mxu0 0.0
  %1213 = vmatpush1.msra.mxu0 0.0
  %1214 = vmatprep.subr.mxu0 0.0
  %1215 = vmatpush1.msra.mxu0 0.0
  %1216 = vmatprep.subr.mxu0 0.0
  %1217 = vmatpush1.msra.mxu0 0.0
  %1218 = vmatprep.subr.mxu0 0.0
  %1219 = vmatpush1.msra.mxu0 0.0
  %1220 = vmatprep.subr.mxu0 0.0
  %1221 = vmatpush1.msra.mxu0 0.0
  %1222 = vmatprep.subr.mxu0 0.0
  %1223 = vmatpush1.msra.mxu0 0.0
  %1224 = vmatprep.subr.mxu0 0.0
  %1225 = vmatpush1.msra.mxu0 0.0
  %1226 = vmatprep.subr.mxu0 0.0
  %1227 = vmatpush1.msra.mxu0 0.0
  %1228 = vmatprep.subr.mxu0 0.0
  %1229 = vmatpush1.msra.mxu0 0.0
  %1230 = vmatprep.subr.mxu0 0.0
  %1231 = vmatpush1.msra.mxu0 0.0
  %1232 = vmatprep.subr.mxu0 0.0
  %1233 = vmatpush1.msra.mxu0 0.0
  %1234 = vmatprep.subr.mxu0 0.0
  %1235 = vmatpush1.msra.mxu0 0.0
  %1236 = vmatprep.subr.mxu0 0.0
  %1237 = vmatpush1.msra.mxu0 0.0
  %1238 = vmatprep.subr.mxu0 0.0
  %1239 = vmatpush1.msra.mxu0 0.0
  %1240 = vmatprep.subr.mxu0 0.0
  %1241 = vmatpush1.msra.mxu0 0.0
  %1242 = vmatprep.subr.mxu0 0.0
  %1243 = vmatpush1.msra.mxu0 0.0
  %1244 = vmatprep.subr.mxu0 0.0
  %1245 = vmatpush1.msra.mxu0 0.0
  %1246 = vmatprep.subr.mxu0 0.0
  %1247 = vmatpush1.msra.mxu0 0.0
  %1248 = vmatprep.subr.mxu0 0.0
  %1249 = vmatpush1.msra.mxu0 0.0
  %1250 = vmatprep.subr.mxu0 0.0
  %1251 = vmatpush1.msra.mxu0 0.0
  %1252 = vmatprep.subr.mxu0 0.0
  %1253 = vmatpush1.msra.mxu0 0.0
  %1254 = vmatprep.mubr.f32.mxu0 0.0
  %1255 = vmatmul.mubr.f32.gmra.mrb[0].mxu0 %v1188
  %v1256 = vpop.f32.mrb[0].mxu0
  %v1257 = vadd.f32 %v330, %v1256
  %v1258 = vpop.f32.mrb[0].mxu0
  %1259 = vdwg.mxu0
  %v1260 = vxor.u32 %v1257, 2147483648
  %v1261 = vmul.f32 %v1260, 1.442695
  %v1262 = vpow.pop %v1261
  %v1263 = vadd.f32 %v1262, 1.0
  %v1264 = vrcp.pop %v1263
  %v1265 = vmul.f32 1.0, %v1264
  %1267 = vrot.lane.b32.xlu0 %v1184, 2
  %v1268 = vpop.permute.xlu0 %1267
  %v1270 = vsub.f32 %v1257, %v1268
  %1272 = vrot.lane.b32.xlu0 %v1270, 126
  %v1273 = vpop.permute.xlu0 %1272
  %v1275 = vmul.f32 %v1265, %v1273
  %v1276 = vadd.f32 %v1184, %v1275
  %1277 = vrot.lane.b32.xlu0 %v1171, 66
  %v1278 = vpop.permute.xlu0 %1277
  %v1280 = vsel %vm428, %v1276, %v1278
  %s1281 = scalar_lea.vmem %s7, 32
  %1282 = vst.msk [vmem:[%s1281] sm:$0xff] %vm205, %v1280
  %s1283 = scalar_lea.vmem %s0, 40
  %v1284 = vld [vmem:[%s1283] sm:$0xff]
  %s1285 = scalar_lea.vmem [#allocation2], 40
  %v1286 = vld [vmem:[%s1285] sm:$0xff]
  %v1288 = vsel %vm205, %v1280, 0
  %1290 = vmatprep.subr.mxu0 0.0
  %1291 = vmatpush1.msra.mxu0 %v191
  %1292 = vmatprep.subr.mxu0 0.0
  %1293 = vmatpush1.msra.mxu0 %v192
  %1294 = vmatprep.subr.mxu0 0.0
  %1295 = vmatpush1.msra.mxu0 %v193
  %1296 = vmatprep.subr.mxu0 0.0
  %1297 = vmatpush1.msra.mxu0 %v194
  %1298 = vmatprep.subr.mxu0 0.0
  %1299 = vmatpush1.msra.mxu0 %v211
  %1300 = vmatprep.subr.mxu0 0.0
  %1301 = vmatpush1.msra.mxu0 0.0
  %1302 = vmatprep.subr.mxu0 0.0
  %1303 = vmatpush1.msra.mxu0 0.0
  %1304 = vmatprep.subr.mxu0 0.0
  %1305 = vmatpush1.msra.mxu0 0.0
  %1306 = vmatprep.subr.mxu0 0.0
  %1307 = vmatpush1.msra.mxu0 0.0
  %1308 = vmatprep.subr.mxu0 0.0
  %1309 = vmatpush1.msra.mxu0 0.0
  %1310 = vmatprep.subr.mxu0 0.0
  %1311 = vmatpush1.msra.mxu0 0.0
  %1312 = vmatprep.subr.mxu0 0.0
  %1313 = vmatpush1.msra.mxu0 0.0
  %1314 = vmatprep.subr.mxu0 0.0
  %1315 = vmatpush1.msra.mxu0 0.0
  %1316 = vmatprep.subr.mxu0 0.0
  %1317 = vmatpush1.msra.mxu0 0.0
  %1318 = vmatprep.subr.mxu0 0.0
  %1319 = vmatpush1.msra.mxu0 0.0
  %1320 = vmatprep.subr.mxu0 0.0
  %1321 = vmatpush1.msra.mxu0 0.0
  %1322 = vmatprep.subr.mxu0 0.0
  %1323 = vmatpush1.msra.mxu0 0.0
  %1324 = vmatprep.subr.mxu0 0.0
  %1325 = vmatpush1.msra.mxu0 0.0
  %1326 = vmatprep.subr.mxu0 0.0
  %1327 = vmatpush1.msra.mxu0 0.0
  %1328 = vmatprep.subr.mxu0 0.0
  %1329 = vmatpush1.msra.mxu0 0.0
  %1330 = vmatprep.subr.mxu0 0.0
  %1331 = vmatpush1.msra.mxu0 0.0
  %1332 = vmatprep.subr.mxu0 0.0
  %1333 = vmatpush1.msra.mxu0 0.0
  %1334 = vmatprep.subr.mxu0 0.0
  %1335 = vmatpush1.msra.mxu0 0.0
  %1336 = vmatprep.subr.mxu0 0.0
  %1337 = vmatpush1.msra.mxu0 0.0
  %1338 = vmatprep.subr.mxu0 0.0
  %1339 = vmatpush1.msra.mxu0 0.0
  %1340 = vmatprep.subr.mxu0 0.0
  %1341 = vmatpush1.msra.mxu0 0.0
  %1342 = vmatprep.subr.mxu0 0.0
  %1343 = vmatpush1.msra.mxu0 0.0
  %1344 = vmatprep.subr.mxu0 0.0
  %1345 = vmatpush1.msra.mxu0 0.0
  %1346 = vmatprep.subr.mxu0 0.0
  %1347 = vmatpush1.msra.mxu0 0.0
  %1348 = vmatprep.subr.mxu0 0.0
  %1349 = vmatpush1.msra.mxu0 0.0
  %1350 = vmatprep.subr.mxu0 0.0
  %1351 = vmatpush1.msra.mxu0 0.0
  %1352 = vmatprep.subr.mxu0 0.0
  %1353 = vmatpush1.msra.mxu0 0.0
  %1354 = vmatprep.mubr.f32.mxu0 0.0
  %1355 = vmatmul.mubr.f32.gmra.mrb[0].mxu0 %v1288
  %v1356 = vpop.f32.mrb[0].mxu0
  %v1357 = vadd.f32 0.0, %v1356
  %v1358 = vpop.f32.mrb[0].mxu0
  %1359 = vdwg.mxu0
  %v1360 = vadd.f32 %v1286, %v1357
  %v1361 = vxor.u32 %v1360, 2147483648
  %v1362 = vmul.f32 %v1361, 1.442695
  %v1363 = vpow.pop %v1362
  %v1364 = vadd.f32 %v1363, 1.0
  %v1365 = vrcp.pop %v1364
  %v1366 = vmul.f32 1.0, %v1365
  %v1367 = vtanh.pop %v1360
  %v1368 = vmul.f32 %v1366, %v1165
  %1370 = vrot.lane.b32.xlu0 %v1367, 32
  %v1371 = vpop.permute.xlu0 %1370
  %v1373 = vmul.f32 %v1366, %v1371
  %1375 = vrot.lane.b32.xlu0 %v1373, 32
  %v1376 = vpop.permute.xlu0 %1375
  %v1378 = vadd.f32 %v1368, %v1376
  %v1379 = vtanh.pop %v1378
  %1381 = vrot.lane.b32.xlu0 %v1379, 32
  %v1382 = vpop.permute.xlu0 %1381
  %v1384 = vmul.f32 %v1366, %v1382
  %1385 = vrot.lane.b32.xlu0 %v1280, 127
  %v1386 = vpop.permute.xlu0 %1385
  %v1388 = vsub.f32 %v1280, %v1386
  %v1389 = vmul.f32 %v1388, 1.5
  %v1390 = vmul.f32 %v1280, 0.6666667
  %1392 = vrot.lane.b32.xlu0 %v1390, 1
  %v1393 = vpop.permute.xlu0 %1392
  %v1395 = vsel %vm322, %v1389, %v1393
  %v1396 = vmul.f32 %v1284, %v1395
  %v1397 = vadd.f32 %v1280, %v1396
  %1399 = vrot.lane.b32.xlu0 %v1384, 64
  %v1400 = vpop.permute.xlu0 %1399
  %v1401 = vsel %vm335, %v1400, 0
  %1403 = vmatprep.subr.mxu0 0.0
  %1404 = vmatpush1.msra.mxu0 %v196
  %1405 = vmatprep.subr.mxu0 0.0
  %1406 = vmatpush1.msra.mxu0 %v197
  %1407 = vmatprep.subr.mxu0 0.0
  %1408 = vmatpush1.msra.mxu0 %v198
  %1409 = vmatprep.subr.mxu0 0.0
  %1410 = vmatpush1.msra.mxu0 %v199
  %1411 = vmatprep.subr.mxu0 0.0
  %1412 = vmatpush1.msra.mxu0 0.0
  %1413 = vmatprep.subr.mxu0 0.0
  %1414 = vmatpush1.msra.mxu0 0.0
  %1415 = vmatprep.subr.mxu0 0.0
  %1416 = vmatpush1.msra.mxu0 0.0
  %1417 = vmatprep.subr.mxu0 0.0
  %1418 = vmatpush1.msra.mxu0 0.0
  %1419 = vmatprep.subr.mxu0 0.0
  %1420 = vmatpush1.msra.mxu0 0.0
  %1421 = vmatprep.subr.mxu0 0.0
  %1422 = vmatpush1.msra.mxu0 0.0
  %1423 = vmatprep.subr.mxu0 0.0
  %1424 = vmatpush1.msra.mxu0 0.0
  %1425 = vmatprep.subr.mxu0 0.0
  %1426 = vmatpush1.msra.mxu0 0.0
  %1427 = vmatprep.subr.mxu0 0.0
  %1428 = vmatpush1.msra.mxu0 0.0
  %1429 = vmatprep.subr.mxu0 0.0
  %1430 = vmatpush1.msra.mxu0 0.0
  %1431 = vmatprep.subr.mxu0 0.0
  %1432 = vmatpush1.msra.mxu0 0.0
  %1433 = vmatprep.subr.mxu0 0.0
  %1434 = vmatpush1.msra.mxu0 0.0
  %1435 = vmatprep.subr.mxu0 0.0
  %1436 = vmatpush1.msra.mxu0 0.0
  %1437 = vmatprep.subr.mxu0 0.0
  %1438 = vmatpush1.msra.mxu0 0.0
  %1439 = vmatprep.subr.mxu0 0.0
  %1440 = vmatpush1.msra.mxu0 0.0
  %1441 = vmatprep.subr.mxu0 0.0
  %1442 = vmatpush1.msra.mxu0 0.0
  %1443 = vmatprep.subr.mxu0 0.0
  %1444 = vmatpush1.msra.mxu0 0.0
  %1445 = vmatprep.subr.mxu0 0.0
  %1446 = vmatpush1.msra.mxu0 0.0
  %1447 = vmatprep.subr.mxu0 0.0
  %1448 = vmatpush1.msra.mxu0 0.0
  %1449 = vmatprep.subr.mxu0 0.0
  %1450 = vmatpush1.msra.mxu0 0.0
  %1451 = vmatprep.subr.mxu0 0.0
  %1452 = vmatpush1.msra.mxu0 0.0
  %1453 = vmatprep.subr.mxu0 0.0
  %1454 = vmatpush1.msra.mxu0 0.0
  %1455 = vmatprep.subr.mxu0 0.0
  %1456 = vmatpush1.msra.mxu0 0.0
  %1457 = vmatprep.subr.mxu0 0.0
  %1458 = vmatpush1.msra.mxu0 0.0
  %1459 = vmatprep.subr.mxu0 0.0
  %1460 = vmatpush1.msra.mxu0 0.0
  %1461 = vmatprep.subr.mxu0 0.0
  %1462 = vmatpush1.msra.mxu0 0.0
  %1463 = vmatprep.subr.mxu0 0.0
  %1464 = vmatpush1.msra.mxu0 0.0
  %1465 = vmatprep.subr.mxu0 0.0
  %1466 = vmatpush1.msra.mxu0 0.0
  %1467 = vmatprep.mubr.f32.mxu0 0.0
  %1468 = vmatmul.mubr.f32.gmra.mrb[0].mxu0 %v1401
  %v1469 = vpop.f32.mrb[0].mxu0
  %v1470 = vadd.f32 %v330, %v1469
  %v1471 = vpop.f32.mrb[0].mxu0
  %1472 = vdwg.mxu0
  %v1473 = vxor.u32 %v1470, 2147483648
  %v1474 = vmul.f32 %v1473, 1.442695
  %v1475 = vpow.pop %v1474
  %v1476 = vadd.f32 %v1475, 1.0
  %v1477 = vrcp.pop %v1476
  %v1478 = vmul.f32 1.0, %v1477
  %1480 = vrot.lane.b32.xlu0 %v1397, 2
  %v1481 = vpop.permute.xlu0 %1480
  %v1483 = vsub.f32 %v1470, %v1481
  %1485 = vrot.lane.b32.xlu0 %v1483, 126
  %v1486 = vpop.permute.xlu0 %1485
  %v1488 = vmul.f32 %v1478, %v1486
  %v1489 = vadd.f32 %v1397, %v1488
  %1490 = vrot.lane.b32.xlu0 %v1384, 66
  %v1491 = vpop.permute.xlu0 %1490
  %v1493 = vsel %vm428, %v1489, %v1491
  %s1494 = scalar_lea.vmem %s7, 40
  %1495 = vst.msk [vmem:[%s1494] sm:$0xff] %vm205, %v1493
  %s1496 = scalar_lea.vmem %s0, 48
  %v1497 = vld [vmem:[%s1496] sm:$0xff]
  %s1498 = scalar_lea.vmem [#allocation2], 48
  %v1499 = vld [vmem:[%s1498] sm:$0xff]
  %v1501 = vsel %vm205, %v1493, 0
  %1503 = vmatprep.subr.mxu0 0.0
  %1504 = vmatpush1.msra.mxu0 %v191
  %1505 = vmatprep.subr.mxu0 0.0
  %1506 = vmatpush1.msra.mxu0 %v192
  %1507 = vmatprep.subr.mxu0 0.0
  %1508 = vmatpush1.msra.mxu0 %v193
  %1509 = vmatprep.subr.mxu0 0.0
  %1510 = vmatpush1.msra.mxu0 %v194
  %1511 = vmatprep.subr.mxu0 0.0
  %1512 = vmatpush1.msra.mxu0 %v211
  %1513 = vmatprep.subr.mxu0 0.0
  %1514 = vmatpush1.msra.mxu0 0.0
  %1515 = vmatprep.subr.mxu0 0.0
  %1516 = vmatpush1.msra.mxu0 0.0
  %1517 = vmatprep.subr.mxu0 0.0
  %1518 = vmatpush1.msra.mxu0 0.0
  %1519 = vmatprep.subr.mxu0 0.0
  %1520 = vmatpush1.msra.mxu0 0.0
  %1521 = vmatprep.subr.mxu0 0.0
  %1522 = vmatpush1.msra.mxu0 0.0
  %1523 = vmatprep.subr.mxu0 0.0
  %1524 = vmatpush1.msra.mxu0 0.0
  %1525 = vmatprep.subr.mxu0 0.0
  %1526 = vmatpush1.msra.mxu0 0.0
  %1527 = vmatprep.subr.mxu0 0.0
  %1528 = vmatpush1.msra.mxu0 0.0
  %1529 = vmatprep.subr.mxu0 0.0
  %1530 = vmatpush1.msra.mxu0 0.0
  %1531 = vmatprep.subr.mxu0 0.0
  %1532 = vmatpush1.msra.mxu0 0.0
  %1533 = vmatprep.subr.mxu0 0.0
  %1534 = vmatpush1.msra.mxu0 0.0
  %1535 = vmatprep.subr.mxu0 0.0
  %1536 = vmatpush1.msra.mxu0 0.0
  %1537 = vmatprep.subr.mxu0 0.0
  %1538 = vmatpush1.msra.mxu0 0.0
  %1539 = vmatprep.subr.mxu0 0.0
  %1540 = vmatpush1.msra.mxu0 0.0
  %1541 = vmatprep.subr.mxu0 0.0
  %1542 = vmatpush1.msra.mxu0 0.0
  %1543 = vmatprep.subr.mxu0 0.0
  %1544 = vmatpush1.msra.mxu0 0.0
  %1545 = vmatprep.subr.mxu0 0.0
  %1546 = vmatpush1.msra.mxu0 0.0
  %1547 = vmatprep.subr.mxu0 0.0
  %1548 = vmatpush1.msra.mxu0 0.0
  %1549 = vmatprep.subr.mxu0 0.0
  %1550 = vmatpush1.msra.mxu0 0.0
  %1551 = vmatprep.subr.mxu0 0.0
  %1552 = vmatpush1.msra.mxu0 0.0
  %1553 = vmatprep.subr.mxu0 0.0
  %1554 = vmatpush1.msra.mxu0 0.0
  %1555 = vmatprep.subr.mxu0 0.0
  %1556 = vmatpush1.msra.mxu0 0.0
  %1557 = vmatprep.subr.mxu0 0.0
  %1558 = vmatpush1.msra.mxu0 0.0
  %1559 = vmatprep.subr.mxu0 0.0
  %1560 = vmatpush1.msra.mxu0 0.0
  %1561 = vmatprep.subr.mxu0 0.0
  %1562 = vmatpush1.msra.mxu0 0.0
  %1563 = vmatprep.subr.mxu0 0.0
  %1564 = vmatpush1.msra.mxu0 0.0
  %1565 = vmatprep.subr.mxu0 0.0
  %1566 = vmatpush1.msra.mxu0 0.0
  %1567 = vmatprep.mubr.f32.mxu0 0.0
  %1568 = vmatmul.mubr.f32.gmra.mrb[0].mxu0 %v1501
  %v1569 = vpop.f32.mrb[0].mxu0
  %v1570 = vadd.f32 0.0, %v1569
  %v1571 = vpop.f32.mrb[0].mxu0
  %1572 = vdwg.mxu0
  %v1573 = vadd.f32 %v1499, %v1570
  %v1574 = vxor.u32 %v1573, 2147483648
  %v1575 = vmul.f32 %v1574, 1.442695
  %v1576 = vpow.pop %v1575
  %v1577 = vadd.f32 %v1576, 1.0
  %v1578 = vrcp.pop %v1577
  %v1579 = vmul.f32 1.0, %v1578
  %v1580 = vtanh.pop %v1573
  %v1581 = vmul.f32 %v1579, %v1378
  %1583 = vrot.lane.b32.xlu0 %v1580, 32
  %v1584 = vpop.permute.xlu0 %1583
  %v1586 = vmul.f32 %v1579, %v1584
  %1588 = vrot.lane.b32.xlu0 %v1586, 32
  %v1589 = vpop.permute.xlu0 %1588
  %v1591 = vadd.f32 %v1581, %v1589
  %v1592 = vtanh.pop %v1591
  %1594 = vrot.lane.b32.xlu0 %v1592, 32
  %v1595 = vpop.permute.xlu0 %1594
  %v1597 = vmul.f32 %v1579, %v1595
  %1598 = vrot.lane.b32.xlu0 %v1493, 127
  %v1599 = vpop.permute.xlu0 %1598
  %v1601 = vsub.f32 %v1493, %v1599
  %v1602 = vmul.f32 %v1601, 1.5
  %v1603 = vmul.f32 %v1493, 0.6666667
  %1605 = vrot.lane.b32.xlu0 %v1603, 1
  %v1606 = vpop.permute.xlu0 %1605
  %v1608 = vsel %vm322, %v1602, %v1606
  %v1609 = vmul.f32 %v1497, %v1608
  %v1610 = vadd.f32 %v1493, %v1609
  %1612 = vrot.lane.b32.xlu0 %v1597, 64
  %v1613 = vpop.permute.xlu0 %1612
  %v1614 = vsel %vm335, %v1613, 0
  %1616 = vmatprep.subr.mxu0 0.0
  %1617 = vmatpush1.msra.mxu0 %v196
  %1618 = vmatprep.subr.mxu0 0.0
  %1619 = vmatpush1.msra.mxu0 %v197
  %1620 = vmatprep.subr.mxu0 0.0
  %1621 = vmatpush1.msra.mxu0 %v198
  %1622 = vmatprep.subr.mxu0 0.0
  %1623 = vmatpush1.msra.mxu0 %v199
  %1624 = vmatprep.subr.mxu0 0.0
  %1625 = vmatpush1.msra.mxu0 0.0
  %1626 = vmatprep.subr.mxu0 0.0
  %1627 = vmatpush1.msra.mxu0 0.0
  %1628 = vmatprep.subr.mxu0 0.0
  %1629 = vmatpush1.msra.mxu0 0.0
  %1630 = vmatprep.subr.mxu0 0.0
  %1631 = vmatpush1.msra.mxu0 0.0
  %1632 = vmatprep.subr.mxu0 0.0
  %1633 = vmatpush1.msra.mxu0 0.0
  %1634 = vmatprep.subr.mxu0 0.0
  %1635 = vmatpush1.msra.mxu0 0.0
  %1636 = vmatprep.subr.mxu0 0.0
  %1637 = vmatpush1.msra.mxu0 0.0
  %1638 = vmatprep.subr.mxu0 0.0
  %1639 = vmatpush1.msra.mxu0 0.0
  %1640 = vmatprep.subr.mxu0 0.0
  %1641 = vmatpush1.msra.mxu0 0.0
  %1642 = vmatprep.subr.mxu0 0.0
  %1643 = vmatpush1.msra.mxu0 0.0
  %1644 = vmatprep.subr.mxu0 0.0
  %1645 = vmatpush1.msra.mxu0 0.0
  %1646 = vmatprep.subr.mxu0 0.0
  %1647 = vmatpush1.msra.mxu0 0.0
  %1648 = vmatprep.subr.mxu0 0.0
  %1649 = vmatpush1.msra.mxu0 0.0
  %1650 = vmatprep.subr.mxu0 0.0
  %1651 = vmatpush1.msra.mxu0 0.0
  %1652 = vmatprep.subr.mxu0 0.0
  %1653 = vmatpush1.msra.mxu0 0.0
  %1654 = vmatprep.subr.mxu0 0.0
  %1655 = vmatpush1.msra.mxu0 0.0
  %1656 = vmatprep.subr.mxu0 0.0
  %1657 = vmatpush1.msra.mxu0 0.0
  %1658 = vmatprep.subr.mxu0 0.0
  %1659 = vmatpush1.msra.mxu0 0.0
  %1660 = vmatprep.subr.mxu0 0.0
  %1661 = vmatpush1.msra.mxu0 0.0
  %1662 = vmatprep.subr.mxu0 0.0
  %1663 = vmatpush1.msra.mxu0 0.0
  %1664 = vmatprep.subr.mxu0 0.0
  %1665 = vmatpush1.msra.mxu0 0.0
  %1666 = vmatprep.subr.mxu0 0.0
  %1667 = vmatpush1.msra.mxu0 0.0
  %1668 = vmatprep.subr.mxu0 0.0
  %1669 = vmatpush1.msra.mxu0 0.0
  %1670 = vmatprep.subr.mxu0 0.0
  %1671 = vmatpush1.msra.mxu0 0.0
  %1672 = vmatprep.subr.mxu0 0.0
  %1673 = vmatpush1.msra.mxu0 0.0
  %1674 = vmatprep.subr.mxu0 0.0
  %1675 = vmatpush1.msra.mxu0 0.0
  %1676 = vmatprep.subr.mxu0 0.0
  %1677 = vmatpush1.msra.mxu0 0.0
  %1678 = vmatprep.subr.mxu0 0.0
  %1679 = vmatpush1.msra.mxu0 0.0
  %1680 = vmatprep.mubr.f32.mxu0 0.0
  %1681 = vmatmul.mubr.f32.gmra.mrb[0].mxu0 %v1614
  %v1682 = vpop.f32.mrb[0].mxu0
  %v1683 = vadd.f32 %v330, %v1682
  %v1684 = vpop.f32.mrb[0].mxu0
  %1685 = vdwg.mxu0
  %v1686 = vxor.u32 %v1683, 2147483648
  %v1687 = vmul.f32 %v1686, 1.442695
  %v1688 = vpow.pop %v1687
  %v1689 = vadd.f32 %v1688, 1.0
  %v1690 = vrcp.pop %v1689
  %v1691 = vmul.f32 1.0, %v1690
  %1693 = vrot.lane.b32.xlu0 %v1610, 2
  %v1694 = vpop.permute.xlu0 %1693
  %v1696 = vsub.f32 %v1683, %v1694
  %1698 = vrot.lane.b32.xlu0 %v1696, 126
  %v1699 = vpop.permute.xlu0 %1698
  %v1701 = vmul.f32 %v1691, %v1699
  %v1702 = vadd.f32 %v1610, %v1701
  %1703 = vrot.lane.b32.xlu0 %v1597, 66
  %v1704 = vpop.permute.xlu0 %1703
  %v1706 = vsel %vm428, %v1702, %v1704
  %s1707 = scalar_lea.vmem %s7, 48
  %1708 = vst.msk [vmem:[%s1707] sm:$0xff] %vm205, %v1706
  %s1709 = scalar_lea.vmem %s0, 56
  %v1710 = vld [vmem:[%s1709] sm:$0xff]
  %s1711 = scalar_lea.vmem [#allocation2], 56
  %v1712 = vld [vmem:[%s1711] sm:$0xff]
  %v1714 = vsel %vm205, %v1706, 0
  %1716 = vmatprep.subr.mxu0 0.0
  %1717 = vmatpush1.msra.mxu0 %v191
  %1718 = vmatprep.subr.mxu0 0.0
  %1719 = vmatpush1.msra.mxu0 %v192
  %1720 = vmatprep.subr.mxu0 0.0
  %1721 = vmatpush1.msra.mxu0 %v193
  %1722 = vmatprep.subr.mxu0 0.0
  %1723 = vmatpush1.msra.mxu0 %v194
  %1724 = vmatprep.subr.mxu0 0.0
  %1725 = vmatpush1.msra.mxu0 %v211
  %1726 = vmatprep.subr.mxu0 0.0
  %1727 = vmatpush1.msra.mxu0 0.0
  %1728 = vmatprep.subr.mxu0 0.0
  %1729 = vmatpush1.msra.mxu0 0.0
  %1730 = vmatprep.subr.mxu0 0.0
  %1731 = vmatpush1.msra.mxu0 0.0
  %1732 = vmatprep.subr.mxu0 0.0
  %1733 = vmatpush1.msra.mxu0 0.0
  %1734 = vmatprep.subr.mxu0 0.0
  %1735 = vmatpush1.msra.mxu0 0.0
  %1736 = vmatprep.subr.mxu0 0.0
  %1737 = vmatpush1.msra.mxu0 0.0
  %1738 = vmatprep.subr.mxu0 0.0
  %1739 = vmatpush1.msra.mxu0 0.0
  %1740 = vmatprep.subr.mxu0 0.0
  %1741 = vmatpush1.msra.mxu0 0.0
  %1742 = vmatprep.subr.mxu0 0.0
  %1743 = vmatpush1.msra.mxu0 0.0
  %1744 = vmatprep.subr.mxu0 0.0
  %1745 = vmatpush1.msra.mxu0 0.0
  %1746 = vmatprep.subr.mxu0 0.0
  %1747 = vmatpush1.msra.mxu0 0.0
  %1748 = vmatprep.subr.mxu0 0.0
  %1749 = vmatpush1.msra.mxu0 0.0
  %1750 = vmatprep.subr.mxu0 0.0
  %1751 = vmatpush1.msra.mxu0 0.0
  %1752 = vmatprep.subr.mxu0 0.0
  %1753 = vmatpush1.msra.mxu0 0.0
  %1754 = vmatprep.subr.mxu0 0.0
  %1755 = vmatpush1.msra.mxu0 0.0
  %1756 = vmatprep.subr.mxu0 0.0
  %1757 = vmatpush1.msra.mxu0 0.0
  %1758 = vmatprep.subr.mxu0 0.0
  %1759 = vmatpush1.msra.mxu0 0.0
  %1760 = vmatprep.subr.mxu0 0.0
  %1761 = vmatpush1.msra.mxu0 0.0
  %1762 = vmatprep.subr.mxu0 0.0
  %1763 = vmatpush1.msra.mxu0 0.0
  %1764 = vmatprep.subr.mxu0 0.0
  %1765 = vmatpush1.msra.mxu0 0.0
  %1766 = vmatprep.subr.mxu0 0.0
  %1767 = vmatpush1.msra.mxu0 0.0
  %1768 = vmatprep.subr.mxu0 0.0
  %1769 = vmatpush1.msra.mxu0 0.0
  %1770 = vmatprep.subr.mxu0 0.0
  %1771 = vmatpush1.msra.mxu0 0.0
  %1772 = vmatprep.subr.mxu0 0.0
  %1773 = vmatpush1.msra.mxu0 0.0
  %1774 = vmatprep.subr.mxu0 0.0
  %1775 = vmatpush1.msra.mxu0 0.0
  %1776 = vmatprep.subr.mxu0 0.0
  %1777 = vmatpush1.msra.mxu0 0.0
  %1778 = vmatprep.subr.mxu0 0.0
  %1779 = vmatpush1.msra.mxu0 0.0
  %1780 = vmatprep.mubr.f32.mxu0 0.0
  %1781 = vmatmul.mubr.f32.gmra.mrb[0].mxu0 %v1714
  %v1782 = vpop.f32.mrb[0].mxu0
  %v1783 = vadd.f32 0.0, %v1782
  %v1784 = vpop.f32.mrb[0].mxu0
  %1785 = vdwg.mxu0
  %v1786 = vadd.f32 %v1712, %v1783
  %v1787 = vxor.u32 %v1786, 2147483648
  %v1788 = vmul.f32 %v1787, 1.442695
  %v1789 = vpow.pop %v1788
  %v1790 = vadd.f32 %v1789, 1.0
  %v1791 = vrcp.pop %v1790
  %v1792 = vmul.f32 1.0, %v1791
  %v1793 = vtanh.pop %v1786
  %v1794 = vmul.f32 %v1792, %v1591
  %1796 = vrot.lane.b32.xlu0 %v1793, 32
  %v1797 = vpop.permute.xlu0 %1796
  %v1799 = vmul.f32 %v1792, %v1797
  %1801 = vrot.lane.b32.xlu0 %v1799, 32
  %v1802 = vpop.permute.xlu0 %1801
  %v1804 = vadd.f32 %v1794, %v1802
  %v1805 = vtanh.pop %v1804
  %1807 = vrot.lane.b32.xlu0 %v1805, 32
  %v1808 = vpop.permute.xlu0 %1807
  %v1810 = vmul.f32 %v1792, %v1808
  %1811 = vrot.lane.b32.xlu0 %v1706, 127
  %v1812 = vpop.permute.xlu0 %1811
  %v1814 = vsub.f32 %v1706, %v1812
  %v1815 = vmul.f32 %v1814, 1.5
  %v1816 = vmul.f32 %v1706, 0.6666667
  %1818 = vrot.lane.b32.xlu0 %v1816, 1
  %v1819 = vpop.permute.xlu0 %1818
  %v1821 = vsel %vm322, %v1815, %v1819
  %v1822 = vmul.f32 %v1710, %v1821
  %v1823 = vadd.f32 %v1706, %v1822
  %1825 = vrot.lane.b32.xlu0 %v1810, 64
  %v1826 = vpop.permute.xlu0 %1825
  %v1827 = vsel %vm335, %v1826, 0
  %1829 = vmatprep.subr.mxu0 0.0
  %1830 = vmatpush1.msra.mxu0 %v196
  %1831 = vmatprep.subr.mxu0 0.0
  %1832 = vmatpush1.msra.mxu0 %v197
  %1833 = vmatprep.subr.mxu0 0.0
  %1834 = vmatpush1.msra.mxu0 %v198
  %1835 = vmatprep.subr.mxu0 0.0
  %1836 = vmatpush1.msra.mxu0 %v199
  %1837 = vmatprep.subr.mxu0 0.0
  %1838 = vmatpush1.msra.mxu0 0.0
  %1839 = vmatprep.subr.mxu0 0.0
  %1840 = vmatpush1.msra.mxu0 0.0
  %1841 = vmatprep.subr.mxu0 0.0
  %1842 = vmatpush1.msra.mxu0 0.0
  %1843 = vmatprep.subr.mxu0 0.0
  %1844 = vmatpush1.msra.mxu0 0.0
  %1845 = vmatprep.subr.mxu0 0.0
  %1846 = vmatpush1.msra.mxu0 0.0
  %1847 = vmatprep.subr.mxu0 0.0
  %1848 = vmatpush1.msra.mxu0 0.0
  %1849 = vmatprep.subr.mxu0 0.0
  %1850 = vmatpush1.msra.mxu0 0.0
  %1851 = vmatprep.subr.mxu0 0.0
  %1852 = vmatpush1.msra.mxu0 0.0
  %1853 = vmatprep.subr.mxu0 0.0
  %1854 = vmatpush1.msra.mxu0 0.0
  %1855 = vmatprep.subr.mxu0 0.0
  %1856 = vmatpush1.msra.mxu0 0.0
  %1857 = vmatprep.subr.mxu0 0.0
  %1858 = vmatpush1.msra.mxu0 0.0
  %1859 = vmatprep.subr.mxu0 0.0
  %1860 = vmatpush1.msra.mxu0 0.0
  %1861 = vmatprep.subr.mxu0 0.0
  %1862 = vmatpush1.msra.mxu0 0.0
  %1863 = vmatprep.subr.mxu0 0.0
  %1864 = vmatpush1.msra.mxu0 0.0
  %1865 = vmatprep.subr.mxu0 0.0
  %1866 = vmatpush1.msra.mxu0 0.0
  %1867 = vmatprep.subr.mxu0 0.0
  %1868 = vmatpush1.msra.mxu0 0.0
  %1869 = vmatprep.subr.mxu0 0.0
  %1870 = vmatpush1.msra.mxu0 0.0
  %1871 = vmatprep.subr.mxu0 0.0
  %1872 = vmatpush1.msra.mxu0 0.0
  %1873 = vmatprep.subr.mxu0 0.0
  %1874 = vmatpush1.msra.mxu0 0.0
  %1875 = vmatprep.subr.mxu0 0.0
  %1876 = vmatpush1.msra.mxu0 0.0
  %1877 = vmatprep.subr.mxu0 0.0
  %1878 = vmatpush1.msra.mxu0 0.0
  %1879 = vmatprep.subr.mxu0 0.0
  %1880 = vmatpush1.msra.mxu0 0.0
  %1881 = vmatprep.subr.mxu0 0.0
  %1882 = vmatpush1.msra.mxu0 0.0
  %1883 = vmatprep.subr.mxu0 0.0
  %1884 = vmatpush1.msra.mxu0 0.0
  %1885 = vmatprep.subr.mxu0 0.0
  %1886 = vmatpush1.msra.mxu0 0.0
  %1887 = vmatprep.subr.mxu0 0.0
  %1888 = vmatpush1.msra.mxu0 0.0
  %1889 = vmatprep.subr.mxu0 0.0
  %1890 = vmatpush1.msra.mxu0 0.0
  %1891 = vmatprep.subr.mxu0 0.0
  %1892 = vmatpush1.msra.mxu0 0.0
  %1893 = vmatprep.mubr.f32.mxu0 0.0
  %1894 = vmatmul.mubr.f32.gmra.mrb[0].mxu0 %v1827
  %v1895 = vpop.f32.mrb[0].mxu0
  %v1896 = vadd.f32 %v330, %v1895
  %v1897 = vpop.f32.mrb[0].mxu0
  %1898 = vdwg.mxu0
  %v1899 = vxor.u32 %v1896, 2147483648
  %v1900 = vmul.f32 %v1899, 1.442695
  %v1901 = vpow.pop %v1900
  %v1902 = vadd.f32 %v1901, 1.0
  %v1903 = vrcp.pop %v1902
  %v1904 = vmul.f32 1.0, %v1903
  %1906 = vrot.lane.b32.xlu0 %v1823, 2
  %v1907 = vpop.permute.xlu0 %1906
  %v1909 = vsub.f32 %v1896, %v1907
  %1911 = vrot.lane.b32.xlu0 %v1909, 126
  %v1912 = vpop.permute.xlu0 %1911
  %v1914 = vmul.f32 %v1904, %v1912
  %v1915 = vadd.f32 %v1823, %v1914
  %1916 = vrot.lane.b32.xlu0 %v1810, 66
  %v1917 = vpop.permute.xlu0 %1916
  %v1919 = vsel %vm428, %v1915, %v1917
  %s1920 = scalar_lea.vmem %s7, 56
  %1921 = vst.msk [vmem:[%s1920] sm:$0xff] %vm205, %v1919
  %1922 = vst.msk [vmem:[%s8] sm:$0xff] %vm205, %v1919
  %1924 = vrot.lane.b32.xlu0 %v1804, 96
  %v1925 = vpop.permute.xlu0 %1924
  %1927 = vst.msk [vmem:[%s9] sm:$0xff] %vm335, %v1925
  // Predicated region
  $region34: #{lstm_forward.1} parent=0 // pred_check
    _
  $region35: #{lstm_forward.1} parent=0 // pred_check_branch
    %1929 = sbr.rel (0) target = $region37
  $region36: #{lstm_forward.1} parent=0 // pred_region
    _
  $region37: #{lstm_forward.1} parent=0 // pred_fallthru
    _
  // Predicated region
  $region38: #{lstm_forward.1} parent=0 // pred_check
    _
  $region39: #{lstm_forward.1} parent=0 // pred_check_branch
    %1931 = sbr.rel (0) target = $region41
  $region40: #{lstm_forward.1} parent=0 // pred_region
    _
  $region41: #{lstm_forward.1} parent=0 // pred_fallthru
    _
  // Predicated region
  $region42: #{lstm_forward.1} parent=0 // pred_check
    _
  $region43: #{lstm_forward.1} parent=0 // pred_check_branch
    %1933 = sbr.rel (0) target = $region45
  $region44: #{lstm_forward.1} parent=0 // pred_region
    _
  $region45: #{lstm_forward.1} parent=0 // pred_fallthru
    _
  // Predicated region
  $region46: #{lstm_forward.1} parent=0 // pred_check
    _
  $region47: #{lstm_forward.1} parent=0 // pred_check_branch
    %1935 = sbr.rel (0) target = $region49
  $region48: #{lstm_forward.1} parent=0 // pred_region
    _
  $region49: #{lstm_forward.1} parent=0 // pred_fallthru
    _
  // Predicated region
  $region50: #{lstm_forward.1} parent=0 // pred_check
    _
  $region51: #{lstm_forward.1} parent=0 // pred_check_branch
    %1937 = sbr.rel (0) target = $region53
  $region52: #{lstm_forward.1} parent=0 // pred_region
    _
  $region53: #{lstm_forward.1} parent=0 // pred_fallthru
    _
  // Predicated region
  $region54: #{lstm_forward.1} parent=0 // pred_check
    _
  $region55: #{lstm_forward.1} parent=0 // pred_check_branch
    %1939 = sbr.rel (0) target = $region57
  $region56: #{lstm_forward.1} parent=0 // pred_region
    _
  $region57: #{lstm_forward.1} parent=0 // pred_fallthru
    _

</llo_original>
